<compile_context>
chip_gen: v6e
topology: v6e:2x2x1
jax: 0.10.0
libtpu: 0.0.40
codegen_flags: <defaults>
</compile_context>

<pallas_src>
import jax
import jax.numpy as jnp
from jax.experimental import pallas as pl
from jax.experimental.pallas import tpu as pltpu


# --------------------------- config (small, synthetic) ---------------------------
FRAME_VOCAB = 28800          # hard-coded in the module
FRAME_EMB_DIM = 200          # hard-coded in the module
NUM_STAGES = 26
STAGE_EMB_DIM = 8
NUM_CHARACTERS = 26
CHARACTER_EMB_DIM = 12
NUM_ACTIONS = 64
ACTION_EMB_DIM = 32
GAMESTATE_DIM = 24
NUM_BUTTONS = 16
NUM_MAIN_STICK_CLUSTERS = 21
NUM_C_STICK_CLUSTERS = 21
HEAD_DIM = NUM_BUTTONS + NUM_MAIN_STICK_CLUSTERS + NUM_C_STICK_CLUSTERS   # = 58
HEAD_PAD = 128                                                            # lane-dense

INPUT_LEN = 8                # data_config.input_len
HIDDEN_SIZE = 128
N_LAYER = 4                  # -> (n_layer - 1) = 3 hidden Linear layers in `mlp`

# n_embd = get_input_size_from_config(embed_config) + frame_emb_dim
N_EMBD = (FRAME_EMB_DIM + STAGE_EMB_DIM + 2 * CHARACTER_EMB_DIM
          + 2 * ACTION_EMB_DIM + GAMESTATE_DIM)          # = 320
FLAT_DIM = INPUT_LEN * N_EMBD                            # = 2560

BATCH = 2
TM_MAX = 512                 # row-block cap: 2.5 MB bf16 x-block per buffer


# --------------------------------- Pallas kernel ---------------------------------
def _mlp_kernel(x_ref,
                w_in_ref, b_in_ref,
                w1_ref, b1_ref,
                w2_ref, b2_ref,
                w3_ref, b3_ref,
                wh_ref, bh_ref,
                out_ref):
    # x and all weights are bf16; every dot is a native bf16xbf16->f32 MXU op.
    h = jnp.dot(x_ref[...], w_in_ref[...],
                preferred_element_type=jnp.float32) + b_in_ref[...]

    # mlp = 3 x [ReLU, Dropout(eval=identity), Linear]
    # TODO(synk): Dropout is eval-mode identity; train-mode masking would use
    # pltpu.prng_seed / pltpu.stateful_bernoulli.
    h = jnp.maximum(h, 0.0).astype(jnp.bfloat16)
    h = jnp.dot(h, w1_ref[...], preferred_element_type=jnp.float32) + b1_ref[...]
    h = jnp.maximum(h, 0.0).astype(jnp.bfloat16)
    h = jnp.dot(h, w2_ref[...], preferred_element_type=jnp.float32) + b2_ref[...]
    h = jnp.maximum(h, 0.0).astype(jnp.bfloat16)
    h = jnp.dot(h, w3_ref[...], preferred_element_type=jnp.float32) + b3_ref[...]

    # fused heads: single (TM, 128) lane-dense bf16 matmul + unmasked full-width store
    out_ref[...] = jnp.dot(h.astype(jnp.bfloat16), wh_ref[...],
                           preferred_element_type=jnp.float32) + bh_ref[...]


def _round_up(x, m):
    return (x + m - 1) // m * m


def mlp_debug_pallas(x_flat, params):
    """x_flat: (B, FLAT_DIM) float32 or bfloat16.
    params: dict of (in,out) bf16 weights / (1,out) f32 biases."""
    B = x_flat.shape[0]

    # Row tiling: pad to a sublane multiple, cap the row block at TM_MAX and pad
    # the batch up to a multiple of tm so every grid step sees a full block.
    m8 = _round_up(max(B, 8), 8)
    tm = m8 if m8 <= TM_MAX else TM_MAX
    m_pad = _round_up(m8, tm)
    grid = (m_pad // tm,)

    if m_pad != B:
        x_flat = jnp.pad(x_flat, ((0, m_pad - B), (0, 0)))
    x_flat = x_flat.astype(jnp.bfloat16)          # halve streamed HBM bytes

    def w_spec(shape):
        # constant block index -> weights stay resident in VMEM across row blocks
        return pl.BlockSpec(shape, lambda i: (0, 0))

    in_specs = [
        pl.BlockSpec((tm, FLAT_DIM), lambda i: (i, 0)),       # x rows (bf16)
        w_spec((FLAT_DIM, HIDDEN_SIZE)), w_spec((1, HIDDEN_SIZE)),
        w_spec((HIDDEN_SIZE, HIDDEN_SIZE)), w_spec((1, HIDDEN_SIZE)),
        w_spec((HIDDEN_SIZE, HIDDEN_SIZE)), w_spec((1, HIDDEN_SIZE)),
        w_spec((HIDDEN_SIZE, HIDDEN_SIZE)), w_spec((1, HIDDEN_SIZE)),
        w_spec((HIDDEN_SIZE, HEAD_PAD)), w_spec((1, HEAD_PAD)),
    ]

    # advisory cost hint for XLA's scheduler around the custom call
    flops = 2 * m_pad * (FLAT_DIM * HIDDEN_SIZE
                         + 3 * HIDDEN_SIZE * HIDDEN_SIZE
                         + HIDDEN_SIZE * HEAD_PAD)
    weight_bytes = 2 * (FLAT_DIM * HIDDEN_SIZE + 3 * HIDDEN_SIZE * HIDDEN_SIZE
                        + HIDDEN_SIZE * HEAD_PAD)
    bias_bytes = 4 * (4 * HIDDEN_SIZE + HEAD_PAD)
    bytes_accessed = (m_pad * FLAT_DIM * 2          # x (bf16)
                      + weight_bytes + bias_bytes
                      + m_pad * HEAD_PAD * 4)       # logits (f32)
    cost = pl.CostEstimate(flops=flops, transcendentals=0,
                           bytes_accessed=bytes_accessed)

    logits = pl.pallas_call(
        _mlp_kernel,
        out_shape=jax.ShapeDtypeStruct((m_pad, HEAD_PAD), jnp.float32),
        grid=grid,
        in_specs=in_specs,
        out_specs=pl.BlockSpec((tm, HEAD_PAD), lambda i: (i, 0)),
        compiler_params=pltpu.CompilerParams(
            dimension_semantics=("parallel",)),     # shards row blocks across v7x TCs
        cost_estimate=cost,
    )(x_flat,
      params["w_in"], params["b_in"],
      params["w1"], params["b1"],
      params["w2"], params["b2"],
      params["w3"], params["b3"],
      params["w_head"], params["b_head"])

    buttons = logits[:B, :NUM_BUTTONS]
    main_stick = logits[:B, NUM_BUTTONS:NUM_BUTTONS + NUM_MAIN_STICK_CLUSTERS]
    c_stick = logits[:B, NUM_BUTTONS + NUM_MAIN_STICK_CLUSTERS:HEAD_DIM]
    return buttons, main_stick, c_stick


# ------------------------------ JAX glue (embeddings) -----------------------------
def build_flat_input(inputs, embeds):
    """Embedding lookups + concat + flatten, matching the PyTorch forward."""
    frame_emb = embeds["frame"][inputs["frame"][..., 0]]                 # (B, L, 200)
    stage_emb = embeds["stage"][inputs["stage"][..., 0]]                 # (B, L, 8)
    ego_char_emb = embeds["character"][inputs["ego_character"][..., 0]]  # (B, L, 12)
    opp_char_emb = embeds["character"][inputs["opponent_character"][..., 0]]
    ego_act_emb = embeds["action"][inputs["ego_action"][..., 0]]         # (B, L, 32)
    opp_act_emb = embeds["action"][inputs["opponent_action"][..., 0]]
    gamestate = inputs["gamestate"]                                      # (B, L, 24)
    concat = jnp.concatenate(
        [frame_emb, stage_emb, ego_char_emb, opp_char_emb,
         ego_act_emb, opp_act_emb, gamestate], axis=-1)                  # (B, L, N_EMBD)
    B = concat.shape[0]
    return concat.reshape(B, -1)                                         # (B, FLAT_DIM)


# ------------------------------- param construction -------------------------------
def make_params(key):
    ks = jax.random.split(key, 32)
    it = iter(ks)

    def dense(k_w, k_b, fan_in, fan_out):
        bound = 1.0 / jnp.sqrt(fan_in)
        w = jax.random.uniform(k_w, (fan_in, fan_out), jnp.float32, -bound, bound)
        b = jax.random.uniform(k_b, (1, fan_out), jnp.float32, -bound, bound)
        return w, b

    embeds = {
        "frame": jax.random.normal(next(it), (FRAME_VOCAB, FRAME_EMB_DIM), jnp.float32) * 0.02,
        "stage": jax.random.normal(next(it), (NUM_STAGES, STAGE_EMB_DIM), jnp.float32) * 0.02,
        "character": jax.random.normal(next(it), (NUM_CHARACTERS, CHARACTER_EMB_DIM), jnp.float32) * 0.02,
        "action": jax.random.normal(next(it), (NUM_ACTIONS, ACTION_EMB_DIM), jnp.float32) * 0.02,
    }

    w_in, b_in = dense(next(it), next(it), FLAT_DIM, HIDDEN_SIZE)
    w1, b1 = dense(next(it), next(it), HIDDEN_SIZE, HIDDEN_SIZE)
    w2, b2 = dense(next(it), next(it), HIDDEN_SIZE, HIDDEN_SIZE)
    w3, b3 = dense(next(it), next(it), HIDDEN_SIZE, HIDDEN_SIZE)
    wb, bb = dense(next(it), next(it), HIDDEN_SIZE, NUM_BUTTONS)
    wm, bm = dense(next(it), next(it), HIDDEN_SIZE, NUM_MAIN_STICK_CLUSTERS)
    wc, bc = dense(next(it), next(it), HIDDEN_SIZE, NUM_C_STICK_CLUSTERS)

    # fuse + lane-pad the three heads to one (128, 128) weight / (1, 128) bias
    w_head = jnp.concatenate(
        [wb, wm, wc, jnp.zeros((HIDDEN_SIZE, HEAD_PAD - HEAD_DIM), jnp.float32)], axis=1)
    b_head = jnp.concatenate(
        [bb, bm, bc, jnp.zeros((1, HEAD_PAD - HEAD_DIM), jnp.float32)], axis=1)

    params = {
        # weights stored bf16 (native MXU operand dtype), biases f32
        "w_in": w_in.astype(jnp.bfloat16), "b_in": b_in,
        "w1": w1.astype(jnp.bfloat16), "b1": b1,
        "w2": w2.astype(jnp.bfloat16), "b2": b2,
        "w3": w3.astype(jnp.bfloat16), "b3": b3,
        "w_head": w_head.astype(jnp.bfloat16), "b_head": b_head,
    }
    return embeds, params


# -------------------------------- pure-JAX reference -------------------------------
def reference_forward(x_flat, p):
    """Mirrors the kernel's numerics: bf16 operands, f32 accumulation, f32 bias add."""
    bf16 = jnp.bfloat16

    def dot(a, b):
        return jnp.dot(a.astype(bf16), b, preferred_element_type=jnp.float32)

    h = dot(x_flat, p["w_in"]) + p["b_in"]
    h = dot(jnp.maximum(h, 0.0), p["w1"]) + p["b1"]
    h = dot(jnp.maximum(h, 0.0), p["w2"]) + p["b2"]
    h = dot(jnp.maximum(h, 0.0), p["w3"]) + p["b3"]
    logits = dot(h, p["w_head"]) + p["b_head"]
    return (logits[:, :NUM_BUTTONS],
            logits[:, NUM_BUTTONS:NUM_BUTTONS + NUM_MAIN_STICK_CLUSTERS],
            logits[:, NUM_BUTTONS + NUM_MAIN_STICK_CLUSTERS:HEAD_DIM])


# --------------------------------------- main --------------------------------------
if __name__ == "__main__":
    key = jax.random.PRNGKey(0)
    k_param, k_in = jax.random.split(key)
    embeds, params = make_params(k_param)

    k = jax.random.split(k_in, 7)
    inputs = {
        "frame": jax.random.randint(k[0], (BATCH, INPUT_LEN, 1), 0, FRAME_VOCAB, jnp.int32),
        "stage": jax.random.randint(k[1], (BATCH, INPUT_LEN, 1), 0, NUM_STAGES, jnp.int32),
        "ego_character": jax.random.randint(k[2], (BATCH, INPUT_LEN, 1), 0, NUM_CHARACTERS, jnp.int32),
        "opponent_character": jax.random.randint(k[3], (BATCH, INPUT_LEN, 1), 0, NUM_CHARACTERS, jnp.int32),
        "ego_action": jax.random.randint(k[4], (BATCH, INPUT_LEN, 1), 0, NUM_ACTIONS, jnp.int32),
        "opponent_action": jax.random.randint(k[5], (BATCH, INPUT_LEN, 1), 0, NUM_ACTIONS, jnp.int32),
        "gamestate": jax.random.normal(k[6], (BATCH, INPUT_LEN, GAMESTATE_DIM), jnp.float32),
    }

    x_flat = build_flat_input(inputs, embeds)
    assert x_flat.shape == (BATCH, FLAT_DIM)

    buttons, main_stick, c_stick = jax.block_until_ready(
        jax.jit(mlp_debug_pallas)(x_flat, params))

    # correctness check vs. pure-JAX reference with matching bf16/f32 numerics
    ref_b, ref_m, ref_c = reference_forward(x_flat, params)
    assert buttons.shape == (BATCH, NUM_BUTTONS)
    assert main_stick.shape == (BATCH, NUM_MAIN_STICK_CLUSTERS)
    assert c_stick.shape == (BATCH, NUM_C_STICK_CLUSTERS)
    assert jnp.allclose(buttons, ref_b, atol=5e-3, rtol=5e-3)
    assert jnp.allclose(main_stick, ref_m, atol=5e-3, rtol=5e-3)
    assert jnp.allclose(c_stick, ref_c, atol=5e-3, rtol=5e-3)

    print("KERNEL_OK")
</pallas_src>

<mosaic_0001>
module attributes {stable_mosaic.version = 11 : i64} {
  func.func @_mlp_kernel(%arg0: i32, %arg1: memref<8x2560xbf16, #tpu.memory_space<vmem>>, %arg2: memref<2560x128xbf16, #tpu.memory_space<vmem>>, %arg3: memref<1x128xf32, #tpu.memory_space<vmem>>, %arg4: memref<128x128xbf16, #tpu.memory_space<vmem>>, %arg5: memref<1x128xf32, #tpu.memory_space<vmem>>, %arg6: memref<128x128xbf16, #tpu.memory_space<vmem>>, %arg7: memref<1x128xf32, #tpu.memory_space<vmem>>, %arg8: memref<128x128xbf16, #tpu.memory_space<vmem>>, %arg9: memref<1x128xf32, #tpu.memory_space<vmem>>, %arg10: memref<128x128xbf16, #tpu.memory_space<vmem>>, %arg11: memref<1x128xf32, #tpu.memory_space<vmem>>, %arg12: memref<8x128xf32, #tpu.memory_space<vmem>>) attributes {dimension_semantics = [#tpu.dimension_semantics<parallel>], iteration_bounds = array<i64: 1>, scalar_prefetch = 0 : i64, scratch_operands = 0 : i64, tpu.core_type = #tpu.core_type<tc>, window_params = [{transform_indices = @transform_0, window_bounds = array<i64: 8, 2560>}, {pipeline_mode = #tpu.pipeline_mode<synchronous>, transform_indices = @transform_1, window_bounds = array<i64: 2560, 128>}, {pipeline_mode = #tpu.pipeline_mode<synchronous>, transform_indices = @transform_2, window_bounds = array<i64: 1, 128>}, {pipeline_mode = #tpu.pipeline_mode<synchronous>, transform_indices = @transform_3, window_bounds = array<i64: 128, 128>}, {pipeline_mode = #tpu.pipeline_mode<synchronous>, transform_indices = @transform_4, window_bounds = array<i64: 1, 128>}, {pipeline_mode = #tpu.pipeline_mode<synchronous>, transform_indices = @transform_5, window_bounds = array<i64: 128, 128>}, {pipeline_mode = #tpu.pipeline_mode<synchronous>, transform_indices = @transform_6, window_bounds = array<i64: 1, 128>}, {pipeline_mode = #tpu.pipeline_mode<synchronous>, transform_indices = @transform_7, window_bounds = array<i64: 128, 128>}, {pipeline_mode = #tpu.pipeline_mode<synchronous>, transform_indices = @transform_8, window_bounds = array<i64: 1, 128>}, {pipeline_mode = #tpu.pipeline_mode<synchronous>, transform_indices = @transform_9, window_bounds = array<i64: 128, 128>}, {pipeline_mode = #tpu.pipeline_mode<synchronous>, transform_indices = @transform_10, window_bounds = array<i64: 1, 128>}, {transform_indices = @transform_11, window_bounds = array<i64: 8, 128>}]} {
    %c0 = arith.constant 0 : index
    %c0_0 = arith.constant 0 : index
    %0 = vector.load %arg1[%c0, %c0_0] : memref<8x2560xbf16, #tpu.memory_space<vmem>>, vector<8x2560xbf16>
    %c0_1 = arith.constant 0 : index
    %c0_2 = arith.constant 0 : index
    %1 = vector.load %arg2[%c0_1, %c0_2] : memref<2560x128xbf16, #tpu.memory_space<vmem>>, vector<2560x128xbf16>
    %cst = arith.constant dense<0.000000e+00> : vector<8x128xf32>
    %2 = tpu.matmul %0, %1, %cst {dimension_numbers = #tpu.dot_dimension_numbers<[1], [0], [0], [1], [0, 0, 1, 1], [], []>} : vector<8x2560xbf16>, vector<2560x128xbf16>, vector<8x128xf32> -> vector<8x128xf32>
    %c0_3 = arith.constant 0 : index
    %c0_4 = arith.constant 0 : index
    %3 = vector.load %arg3[%c0_3, %c0_4] : memref<1x128xf32, #tpu.memory_space<vmem>>, vector<1x128xf32>
    %4 = vector.broadcast %3 : vector<1x128xf32> to vector<8x128xf32>
    %5 = arith.addf %2, %4 : vector<8x128xf32>
    %cst_5 = arith.constant 0.000000e+00 : f32
    %6 = vector.broadcast %cst_5 : f32 to vector<8x128xf32>
    %7 = arith.maximumf %5, %6 : vector<8x128xf32>
    %8 = arith.truncf %7 : vector<8x128xf32> to vector<8x128xbf16>
    %c0_6 = arith.constant 0 : index
    %c0_7 = arith.constant 0 : index
    %9 = vector.load %arg4[%c0_6, %c0_7] : memref<128x128xbf16, #tpu.memory_space<vmem>>, vector<128x128xbf16>
    %cst_8 = arith.constant dense<0.000000e+00> : vector<8x128xf32>
    %10 = tpu.matmul %8, %9, %cst_8 {dimension_numbers = #tpu.dot_dimension_numbers<[1], [0], [0], [1], [0, 0, 1, 1], [], []>} : vector<8x128xbf16>, vector<128x128xbf16>, vector<8x128xf32> -> vector<8x128xf32>
    %c0_9 = arith.constant 0 : index
    %c0_10 = arith.constant 0 : index
    %11 = vector.load %arg5[%c0_9, %c0_10] : memref<1x128xf32, #tpu.memory_space<vmem>>, vector<1x128xf32>
    %12 = vector.broadcast %11 : vector<1x128xf32> to vector<8x128xf32>
    %13 = arith.addf %10, %12 : vector<8x128xf32>
    %cst_11 = arith.constant 0.000000e+00 : f32
    %14 = vector.broadcast %cst_11 : f32 to vector<8x128xf32>
    %15 = arith.maximumf %13, %14 : vector<8x128xf32>
    %16 = arith.truncf %15 : vector<8x128xf32> to vector<8x128xbf16>
    %c0_12 = arith.constant 0 : index
    %c0_13 = arith.constant 0 : index
    %17 = vector.load %arg6[%c0_12, %c0_13] : memref<128x128xbf16, #tpu.memory_space<vmem>>, vector<128x128xbf16>
    %cst_14 = arith.constant dense<0.000000e+00> : vector<8x128xf32>
    %18 = tpu.matmul %16, %17, %cst_14 {dimension_numbers = #tpu.dot_dimension_numbers<[1], [0], [0], [1], [0, 0, 1, 1], [], []>} : vector<8x128xbf16>, vector<128x128xbf16>, vector<8x128xf32> -> vector<8x128xf32>
    %c0_15 = arith.constant 0 : index
    %c0_16 = arith.constant 0 : index
    %19 = vector.load %arg7[%c0_15, %c0_16] : memref<1x128xf32, #tpu.memory_space<vmem>>, vector<1x128xf32>
    %20 = vector.broadcast %19 : vector<1x128xf32> to vector<8x128xf32>
    %21 = arith.addf %18, %20 : vector<8x128xf32>
    %cst_17 = arith.constant 0.000000e+00 : f32
    %22 = vector.broadcast %cst_17 : f32 to vector<8x128xf32>
    %23 = arith.maximumf %21, %22 : vector<8x128xf32>
    %24 = arith.truncf %23 : vector<8x128xf32> to vector<8x128xbf16>
    %c0_18 = arith.constant 0 : index
    %c0_19 = arith.constant 0 : index
    %25 = vector.load %arg8[%c0_18, %c0_19] : memref<128x128xbf16, #tpu.memory_space<vmem>>, vector<128x128xbf16>
    %cst_20 = arith.constant dense<0.000000e+00> : vector<8x128xf32>
    %26 = tpu.matmul %24, %25, %cst_20 {dimension_numbers = #tpu.dot_dimension_numbers<[1], [0], [0], [1], [0, 0, 1, 1], [], []>} : vector<8x128xbf16>, vector<128x128xbf16>, vector<8x128xf32> -> vector<8x128xf32>
    %c0_21 = arith.constant 0 : index
    %c0_22 = arith.constant 0 : index
    %27 = vector.load %arg9[%c0_21, %c0_22] : memref<1x128xf32, #tpu.memory_space<vmem>>, vector<1x128xf32>
    %28 = vector.broadcast %27 : vector<1x128xf32> to vector<8x128xf32>
    %29 = arith.addf %26, %28 : vector<8x128xf32>
    %30 = arith.truncf %29 : vector<8x128xf32> to vector<8x128xbf16>
    %c0_23 = arith.constant 0 : index
    %c0_24 = arith.constant 0 : index
    %31 = vector.load %arg10[%c0_23, %c0_24] : memref<128x128xbf16, #tpu.memory_space<vmem>>, vector<128x128xbf16>
    %cst_25 = arith.constant dense<0.000000e+00> : vector<8x128xf32>
    %32 = tpu.matmul %30, %31, %cst_25 {dimension_numbers = #tpu.dot_dimension_numbers<[1], [0], [0], [1], [0, 0, 1, 1], [], []>} : vector<8x128xbf16>, vector<128x128xbf16>, vector<8x128xf32> -> vector<8x128xf32>
    %c0_26 = arith.constant 0 : index
    %c0_27 = arith.constant 0 : index
    %33 = vector.load %arg11[%c0_26, %c0_27] : memref<1x128xf32, #tpu.memory_space<vmem>>, vector<1x128xf32>
    %34 = vector.broadcast %33 : vector<1x128xf32> to vector<8x128xf32>
    %35 = arith.addf %32, %34 : vector<8x128xf32>
    %c0_28 = arith.constant 0 : index
    %c0_29 = arith.constant 0 : index
    %36 = vector.load %arg12[%c0_28, %c0_29] : memref<8x128xf32, #tpu.memory_space<vmem>>, vector<8x128xf32>
    tpu.vector_store %arg12[%c0_28, %c0_29], %35 {strides = array<i32>} : memref<8x128xf32, #tpu.memory_space<vmem>>, vector<8x128xf32>,
    return
  }
  func.func @transform_0(%arg0: i32) -> (i32, i32) {
    %c0_i32 = arith.constant 0 : i32
    %c0_i32_0 = arith.constant 0 : i32
    return %arg0, %c0_i32 : i32, i32
  }
  func.func @transform_1(%arg0: i32) -> (i32, i32) {
    %c0_i32 = arith.constant 0 : i32
    %c0_i32_0 = arith.constant 0 : i32
    %c0_i32_1 = arith.constant 0 : i32
    return %c0_i32, %c0_i32_0 : i32, i32
  }
  func.func @transform_2(%arg0: i32) -> (i32, i32) {
    %c0_i32 = arith.constant 0 : i32
    %c0_i32_0 = arith.constant 0 : i32
    %c0_i32_1 = arith.constant 0 : i32
    return %c0_i32, %c0_i32_0 : i32, i32
  }
  func.func @transform_3(%arg0: i32) -> (i32, i32) {
    %c0_i32 = arith.constant 0 : i32
    %c0_i32_0 = arith.constant 0 : i32
    %c0_i32_1 = arith.constant 0 : i32
    return %c0_i32, %c0_i32_0 : i32, i32
  }
  func.func @transform_4(%arg0: i32) -> (i32, i32) {
    %c0_i32 = arith.constant 0 : i32
    %c0_i32_0 = arith.constant 0 : i32
    %c0_i32_1 = arith.constant 0 : i32
    return %c0_i32, %c0_i32_0 : i32, i32
  }
  func.func @transform_5(%arg0: i32) -> (i32, i32) {
    %c0_i32 = arith.constant 0 : i32
    %c0_i32_0 = arith.constant 0 : i32
    %c0_i32_1 = arith.constant 0 : i32
    return %c0_i32, %c0_i32_0 : i32, i32
  }
  func.func @transform_6(%arg0: i32) -> (i32, i32) {
    %c0_i32 = arith.constant 0 : i32
    %c0_i32_0 = arith.constant 0 : i32
    %c0_i32_1 = arith.constant 0 : i32
    return %c0_i32, %c0_i32_0 : i32, i32
  }
  func.func @transform_7(%arg0: i32) -> (i32, i32) {
    %c0_i32 = arith.constant 0 : i32
    %c0_i32_0 = arith.constant 0 : i32
    %c0_i32_1 = arith.constant 0 : i32
    return %c0_i32, %c0_i32_0 : i32, i32
  }
  func.func @transform_8(%arg0: i32) -> (i32, i32) {
    %c0_i32 = arith.constant 0 : i32
    %c0_i32_0 = arith.constant 0 : i32
    %c0_i32_1 = arith.constant 0 : i32
    return %c0_i32, %c0_i32_0 : i32, i32
  }
  func.func @transform_9(%arg0: i32) -> (i32, i32) {
    %c0_i32 = arith.constant 0 : i32
    %c0_i32_0 = arith.constant 0 : i32
    %c0_i32_1 = arith.constant 0 : i32
    return %c0_i32, %c0_i32_0 : i32, i32
  }
  func.func @transform_10(%arg0: i32) -> (i32, i32) {
    %c0_i32 = arith.constant 0 : i32
    %c0_i32_0 = arith.constant 0 : i32
    %c0_i32_1 = arith.constant 0 : i32
    return %c0_i32, %c0_i32_0 : i32, i32
  }
  func.func @transform_11(%arg0: i32) -> (i32, i32) {
    %c0_i32 = arith.constant 0 : i32
    %c0_i32_0 = arith.constant 0 : i32
    return %arg0, %c0_i32 : i32, i32
  }
}

</mosaic_0001>

<llo_original>
// kernel: mlp_debug_pallas.1
$region0: #{mlp_debug_pallas.1}
  #allocation0 [shape = 'u32[]', space=smem, size = 0x4, offset = 0x4, fixed_abs, tag = 'smem constant byte address 0x4 - core index']
  #allocation1 [shape = 'u32[144,128]{1,0:T(1,128)}', space=vmem, size = 0x12000, scoped, tag = 'internal scratch']
  %s0 = inlined_call_operand.vmem [shape: bf16[8,2560], index: 0, kind: input, shape index: {}]
  %s1 = inlined_call_operand.hbm [shape: bf16[2560,128], index: 1, kind: input, shape index: {}]
  %s2 = inlined_call_operand.vmem [shape: f32[1,128], index: 2, kind: input, shape index: {}]
  %s3 = inlined_call_operand.vmem [shape: bf16[128,128], index: 3, kind: input, shape index: {}]
  %s4 = inlined_call_operand.vmem [shape: f32[1,128], index: 4, kind: input, shape index: {}]
  %s5 = inlined_call_operand.vmem [shape: bf16[128,128], index: 5, kind: input, shape index: {}]
  %s6 = inlined_call_operand.vmem [shape: f32[1,128], index: 6, kind: input, shape index: {}]
  %s7 = inlined_call_operand.hbm [shape: bf16[128,128], index: 7, kind: input, shape index: {}]
  %s8 = inlined_call_operand.vmem [shape: f32[1,128], index: 8, kind: input, shape index: {}]
  %s9 = inlined_call_operand.hbm [shape: bf16[128,128], index: 9, kind: input, shape index: {}]
  %s10 = inlined_call_operand.vmem [shape: f32[1,128], index: 10, kind: input, shape index: {}]
  %s11 = inlined_call_operand.vmem [shape: f32[8,128], index: 11, kind: output, shape index: {}]
  %s12 = sld [smem:[#allocation0]]
  $region66: #{mlp_debug_pallas.1} parent=0
    _
  %s14 = ssub.s32 1, %s12
  %s15 = scalar_select 0, %s14, %s12
  $region1: #{mlp_debug_pallas.1} parent=0
    #allocation2 [shape = 'u8[655360]{0}', space=vmem, size = 0xa0000, scoped, tag = 'input window, operand 1, single buffered']
    #allocation3 [shape = 's32[1]{0}', space=sflag, size = 0x4, scoped, tag = 'scoped memory for mlp_debug_pallas.1']
    #allocation4 [shape = 'u8[32768]{0}', space=vmem, size = 0x8000, scoped, tag = 'input window, operand 7, single buffered']
    #allocation5 [shape = 's32[1]{0}', space=sflag, size = 0x4, scoped, tag = 'scoped memory for mlp_debug_pallas.1']
    #allocation6 [shape = 'u8[32768]{0}', space=vmem, size = 0x8000, scoped, tag = 'input window, operand 9, single buffered']
    %16 = vsyncpa [#allocation3], 0
    %17 = vsyncpa [#allocation5], 0
    // Predicated region
    $region2: #{mlp_debug_pallas.1} parent=1 // pred_check
      _
    $region3: #{mlp_debug_pallas.1} parent=1 // pred_check_branch
      %19 = sbr.rel (0) target = $region5
    $region4: #{mlp_debug_pallas.1} parent=1 // pred_region
      _
    $region5: #{mlp_debug_pallas.1} parent=1 // pred_fallthru
      _
    // Predicated region
    $region6: #{mlp_debug_pallas.1} parent=1 // pred_check
      _
    $region7: #{mlp_debug_pallas.1} parent=1 // pred_check_branch
      %21 = sbr.rel (0) target = $region9
    $region8: #{mlp_debug_pallas.1} parent=1 // pred_region
      %s23 = ssub.s32 20480, 20480
      %24 = vsyncadd [#allocation3], %s23
      %s25 = sshll.u32 [#allocation2], 4
      %s26 = int_to_ptr.vmem [resolvable:$true] %s25
      %31 = dma.hbm_to_vmem [thread:$0]  %s1, 20480, %s26, [#allocation3], 64, 64, 4
    $region9: #{mlp_debug_pallas.1} parent=1 // pred_fallthru
      _
    // Predicated region
    $region10: #{mlp_debug_pallas.1} parent=1 // pred_check
      _
    $region11: #{mlp_debug_pallas.1} parent=1 // pred_check_branch
      %33 = sbr.rel (0) target = $region13
    $region12: #{mlp_debug_pallas.1} parent=1 // pred_region
      _
    $region13: #{mlp_debug_pallas.1} parent=1 // pred_fallthru
      _
    // Predicated region
    $region14: #{mlp_debug_pallas.1} parent=1 // pred_check
      _
    $region15: #{mlp_debug_pallas.1} parent=1 // pred_check_branch
      %35 = sbr.rel (0) target = $region17
    $region16: #{mlp_debug_pallas.1} parent=1 // pred_region
      _
    $region17: #{mlp_debug_pallas.1} parent=1 // pred_fallthru
      _
    // Predicated region
    $region18: #{mlp_debug_pallas.1} parent=1 // pred_check
      _
    $region19: #{mlp_debug_pallas.1} parent=1 // pred_check_branch
      %37 = sbr.rel (0) target = $region21
    $region20: #{mlp_debug_pallas.1} parent=1 // pred_region
      _
    $region21: #{mlp_debug_pallas.1} parent=1 // pred_fallthru
      _
    // Predicated region
    $region22: #{mlp_debug_pallas.1} parent=1 // pred_check
      _
    $region23: #{mlp_debug_pallas.1} parent=1 // pred_check_branch
      %39 = sbr.rel (0) target = $region25
    $region24: #{mlp_debug_pallas.1} parent=1 // pred_region
      _
    $region25: #{mlp_debug_pallas.1} parent=1 // pred_fallthru
      _
    // Predicated region
    $region26: #{mlp_debug_pallas.1} parent=1 // pred_check
      _
    $region27: #{mlp_debug_pallas.1} parent=1 // pred_check_branch
      %41 = sbr.rel (0) target = $region29
    $region28: #{mlp_debug_pallas.1} parent=1 // pred_region
      _
    $region29: #{mlp_debug_pallas.1} parent=1 // pred_fallthru
      _
    // Predicated region
    $region30: #{mlp_debug_pallas.1} parent=1 // pred_check
      _
    $region31: #{mlp_debug_pallas.1} parent=1 // pred_check_branch
      %43 = sbr.rel (0) target = $region33
    $region32: #{mlp_debug_pallas.1} parent=1 // pred_region
      %s45 = ssub.s32 1024, 1024
      %46 = vsyncadd [#allocation5], %s45
      %s47 = sshll.u32 [#allocation4], 4
      %s48 = int_to_ptr.vmem [resolvable:$true] %s47
      %53 = dma.hbm_to_vmem [thread:$0]  %s7, 1024, %s48, [#allocation5], 64, 64, 4
    $region33: #{mlp_debug_pallas.1} parent=1 // pred_fallthru
      _
    // Predicated region
    $region34: #{mlp_debug_pallas.1} parent=1 // pred_check
      _
    $region35: #{mlp_debug_pallas.1} parent=1 // pred_check_branch
      %55 = sbr.rel (0) target = $region37
    $region36: #{mlp_debug_pallas.1} parent=1 // pred_region
      _
    $region37: #{mlp_debug_pallas.1} parent=1 // pred_fallthru
      _
    // Predicated region
    $region38: #{mlp_debug_pallas.1} parent=1 // pred_check
      _
    $region39: #{mlp_debug_pallas.1} parent=1 // pred_check_branch
      %57 = sbr.rel (0) target = $region41
    $region40: #{mlp_debug_pallas.1} parent=1 // pred_region
      %s59 = ssub.s32 1024, 1024
      %60 = vsyncadd [#allocation5], %s59
      %s61 = sshll.u32 [#allocation6], 4
      %s62 = int_to_ptr.vmem [resolvable:$true] %s61
      %67 = dma.hbm_to_vmem [thread:$0]  %s9, 1024, %s62, [#allocation5], 64, 64, 4
    $region41: #{mlp_debug_pallas.1} parent=1 // pred_fallthru
      _
    // Predicated region
    $region42: #{mlp_debug_pallas.1} parent=1 // pred_check
      _
    $region43: #{mlp_debug_pallas.1} parent=1 // pred_check_branch
      %69 = sbr.rel (0) target = $region45
    $region44: #{mlp_debug_pallas.1} parent=1 // pred_region
      _
    $region45: #{mlp_debug_pallas.1} parent=1 // pred_fallthru
      _
    // Predicated region
    $region46: #{mlp_debug_pallas.1} parent=1 // pred_check
      _
    $region47: #{mlp_debug_pallas.1} parent=1 // pred_check_branch
      %71 = sbr.rel (0) target = $region49
    $region48: #{mlp_debug_pallas.1} parent=1 // pred_region
      %72 = dma.done [#allocation3], 20480
    $region49: #{mlp_debug_pallas.1} parent=1 // pred_fallthru
      _
    // Predicated region
    $region50: #{mlp_debug_pallas.1} parent=1 // pred_check
      _
    $region51: #{mlp_debug_pallas.1} parent=1 // pred_check_branch
      %74 = sbr.rel (0) target = $region53
    $region52: #{mlp_debug_pallas.1} parent=1 // pred_region
      %75 = dma.done [#allocation5], 1024
    $region53: #{mlp_debug_pallas.1} parent=1 // pred_fallthru
      _
    // Predicated region
    $region54: #{mlp_debug_pallas.1} parent=1 // pred_check
      _
    $region55: #{mlp_debug_pallas.1} parent=1 // pred_check_branch
      %77 = sbr.rel (0) target = $region57
    $region56: #{mlp_debug_pallas.1} parent=1 // pred_region
      %78 = dma.done [#allocation5], 1024
    $region57: #{mlp_debug_pallas.1} parent=1 // pred_fallthru
      _
    %v80 = vld [vmem:[%s0] sm:$0xff]
    %v81 = vld [vmem:[%s0 + $0x8] sm:$0xff]
    %v82 = vld [vmem:[%s0 + $0x10] sm:$0xff]
    %v83 = vld [vmem:[%s0 + $0x18] sm:$0xff]
    %v84 = vld [vmem:[%s0 + $0x20] sm:$0xff]
    %v85 = vld [vmem:[%s0 + $0x28] sm:$0xff]
    %v86 = vld [vmem:[%s0 + $0x30] sm:$0xff]
    %v87 = vld [vmem:[%s0 + $0x38] sm:$0xff]
    %v88 = vld [vmem:[%s0 + $0x40] sm:$0xff]
    %v89 = vld [vmem:[%s0 + $0x48] sm:$0xff]
    %v90 = vld [vmem:[#allocation2] sm:$0xf]
    %v91 = vld [vmem:[#allocation2 + $0x4] sm:$0xf]
    %v92 = vld [vmem:[#allocation2 + $0x8] sm:$0xf]
    %v93 = vld [vmem:[#allocation2 + $0xc] sm:$0xf]
    %v94 = vld [vmem:[#allocation2 + $0x10] sm:$0xf]
    %v95 = vld [vmem:[#allocation2 + $0x14] sm:$0xf]
    %v96 = vld [vmem:[#allocation2 + $0x18] sm:$0xf]
    %v97 = vld [vmem:[#allocation2 + $0x1c] sm:$0xf]
    %v98 = vld [vmem:[#allocation2 + $0x20] sm:$0xf]
    %v99 = vld [vmem:[#allocation2 + $0x24] sm:$0xf]
    %v100 = vld [vmem:[#allocation2 + $0x28] sm:$0xf]
    %v101 = vld [vmem:[#allocation2 + $0x2c] sm:$0xf]
    %v102 = vld [vmem:[#allocation2 + $0x30] sm:$0xf]
    %v103 = vld [vmem:[#allocation2 + $0x34] sm:$0xf]
    %v104 = vld [vmem:[#allocation2 + $0x38] sm:$0xf]
    %v105 = vld [vmem:[#allocation2 + $0x3c] sm:$0xf]
    %v106 = vld [vmem:[#allocation2 + $0x40] sm:$0xf]
    %v107 = vld [vmem:[#allocation2 + $0x44] sm:$0xf]
    %v108 = vld [vmem:[#allocation2 + $0x48] sm:$0xf]
    %v109 = vld [vmem:[#allocation2 + $0x4c] sm:$0xf]
    %v110 = vld [vmem:[#allocation2 + $0x50] sm:$0xf]
    %v111 = vld [vmem:[#allocation2 + $0x54] sm:$0xf]
    %v112 = vld [vmem:[#allocation2 + $0x58] sm:$0xf]
    %v113 = vld [vmem:[#allocation2 + $0x5c] sm:$0xf]
    %v114 = vld [vmem:[#allocation2 + $0x60] sm:$0xf]
    %v115 = vld [vmem:[#allocation2 + $0x64] sm:$0xf]
    %v116 = vld [vmem:[#allocation2 + $0x68] sm:$0xf]
    %v117 = vld [vmem:[#allocation2 + $0x6c] sm:$0xf]
    %v118 = vld [vmem:[#allocation2 + $0x70] sm:$0xf]
    %v119 = vld [vmem:[#allocation2 + $0x74] sm:$0xf]
    %v120 = vld [vmem:[#allocation2 + $0x78] sm:$0xf]
    %v121 = vld [vmem:[#allocation2 + $0x7c] sm:$0xf]
    %v122 = vld [vmem:[#allocation2 + $0x80] sm:$0xf]
    %v123 = vld [vmem:[#allocation2 + $0x84] sm:$0xf]
    %v124 = vld [vmem:[#allocation2 + $0x88] sm:$0xf]
    %v125 = vld [vmem:[#allocation2 + $0x8c] sm:$0xf]
    %v126 = vld [vmem:[#allocation2 + $0x90] sm:$0xf]
    %v127 = vld [vmem:[#allocation2 + $0x94] sm:$0xf]
    %v128 = vld [vmem:[#allocation2 + $0x98] sm:$0xf]
    %v129 = vld [vmem:[#allocation2 + $0x9c] sm:$0xf]
    %v130 = vld [vmem:[#allocation2 + $0xa0] sm:$0xf]
    %v131 = vld [vmem:[#allocation2 + $0xa4] sm:$0xf]
    %v132 = vld [vmem:[#allocation2 + $0xa8] sm:$0xf]
    %v133 = vld [vmem:[#allocation2 + $0xac] sm:$0xf]
    %v134 = vld [vmem:[#allocation2 + $0xb0] sm:$0xf]
    %v135 = vld [vmem:[#allocation2 + $0xb4] sm:$0xf]
    %v136 = vld [vmem:[#allocation2 + $0xb8] sm:$0xf]
    %v137 = vld [vmem:[#allocation2 + $0xbc] sm:$0xf]
    %v138 = vld [vmem:[#allocation2 + $0xc0] sm:$0xf]
    %v139 = vld [vmem:[#allocation2 + $0xc4] sm:$0xf]
    %v140 = vld [vmem:[#allocation2 + $0xc8] sm:$0xf]
    %v141 = vld [vmem:[#allocation2 + $0xcc] sm:$0xf]
    %v142 = vld [vmem:[#allocation2 + $0xd0] sm:$0xf]
    %v143 = vld [vmem:[#allocation2 + $0xd4] sm:$0xf]
    %v144 = vld [vmem:[#allocation2 + $0xd8] sm:$0xf]
    %v145 = vld [vmem:[#allocation2 + $0xdc] sm:$0xf]
    %v146 = vld [vmem:[#allocation2 + $0xe0] sm:$0xf]
    %v147 = vld [vmem:[#allocation2 + $0xe4] sm:$0xf]
    %v148 = vld [vmem:[#allocation2 + $0xe8] sm:$0xf]
    %v149 = vld [vmem:[#allocation2 + $0xec] sm:$0xf]
    %v150 = vld [vmem:[#allocation2 + $0xf0] sm:$0xf]
    %v151 = vld [vmem:[#allocation2 + $0xf4] sm:$0xf]
    %v152 = vld [vmem:[#allocation2 + $0xf8] sm:$0xf]
    %v153 = vld [vmem:[#allocation2 + $0xfc] sm:$0xf]
    %v154 = vld [vmem:[#allocation2 + $0x100] sm:$0xf]
    %v155 = vld [vmem:[#allocation2 + $0x104] sm:$0xf]
    %v156 = vld [vmem:[#allocation2 + $0x108] sm:$0xf]
    %v157 = vld [vmem:[#allocation2 + $0x10c] sm:$0xf]
    %v158 = vld [vmem:[#allocation2 + $0x110] sm:$0xf]
    %v159 = vld [vmem:[#allocation2 + $0x114] sm:$0xf]
    %v160 = vld [vmem:[#allocation2 + $0x118] sm:$0xf]
    %v161 = vld [vmem:[#allocation2 + $0x11c] sm:$0xf]
    %v162 = vld [vmem:[#allocation2 + $0x120] sm:$0xf]
    %v163 = vld [vmem:[#allocation2 + $0x124] sm:$0xf]
    %v164 = vld [vmem:[#allocation2 + $0x128] sm:$0xf]
    %v165 = vld [vmem:[#allocation2 + $0x12c] sm:$0xf]
    %v166 = vld [vmem:[#allocation2 + $0x130] sm:$0xf]
    %v167 = vld [vmem:[#allocation2 + $0x134] sm:$0xf]
    %v168 = vld [vmem:[#allocation2 + $0x138] sm:$0xf]
    %v169 = vld [vmem:[#allocation2 + $0x13c] sm:$0xf]
    %v170 = vld [vmem:[#allocation2 + $0x140] sm:$0xf]
    %v171 = vld [vmem:[#allocation2 + $0x144] sm:$0xf]
    %v172 = vld [vmem:[#allocation2 + $0x148] sm:$0xf]
    %v173 = vld [vmem:[#allocation2 + $0x14c] sm:$0xf]
    %v174 = vld [vmem:[#allocation2 + $0x150] sm:$0xf]
    %v175 = vld [vmem:[#allocation2 + $0x154] sm:$0xf]
    %v176 = vld [vmem:[#allocation2 + $0x158] sm:$0xf]
    %v177 = vld [vmem:[#allocation2 + $0x15c] sm:$0xf]
    %v178 = vld [vmem:[#allocation2 + $0x160] sm:$0xf]
    %v179 = vld [vmem:[#allocation2 + $0x164] sm:$0xf]
    %v180 = vld [vmem:[#allocation2 + $0x168] sm:$0xf]
    %v181 = vld [vmem:[#allocation2 + $0x16c] sm:$0xf]
    %v182 = vld [vmem:[#allocation2 + $0x170] sm:$0xf]
    %v183 = vld [vmem:[#allocation2 + $0x174] sm:$0xf]
    %v184 = vld [vmem:[#allocation2 + $0x178] sm:$0xf]
    %v185 = vld [vmem:[#allocation2 + $0x17c] sm:$0xf]
    %v186 = vld [vmem:[#allocation2 + $0x180] sm:$0xf]
    %v187 = vld [vmem:[#allocation2 + $0x184] sm:$0xf]
    %v188 = vld [vmem:[#allocation2 + $0x188] sm:$0xf]
    %v189 = vld [vmem:[#allocation2 + $0x18c] sm:$0xf]
    %v190 = vld [vmem:[#allocation2 + $0x190] sm:$0xf]
    %v191 = vld [vmem:[#allocation2 + $0x194] sm:$0xf]
    %v192 = vld [vmem:[#allocation2 + $0x198] sm:$0xf]
    %v193 = vld [vmem:[#allocation2 + $0x19c] sm:$0xf]
    %v194 = vld [vmem:[#allocation2 + $0x1a0] sm:$0xf]
    %v195 = vld [vmem:[#allocation2 + $0x1a4] sm:$0xf]
    %v196 = vld [vmem:[#allocation2 + $0x1a8] sm:$0xf]
    %v197 = vld [vmem:[#allocation2 + $0x1ac] sm:$0xf]
    %v198 = vld [vmem:[#allocation2 + $0x1b0] sm:$0xf]
    %v199 = vld [vmem:[#allocation2 + $0x1b4] sm:$0xf]
    %v200 = vld [vmem:[#allocation2 + $0x1b8] sm:$0xf]
    %v201 = vld [vmem:[#allocation2 + $0x1bc] sm:$0xf]
    %v202 = vld [vmem:[#allocation2 + $0x1c0] sm:$0xf]
    %v203 = vld [vmem:[#allocation2 + $0x1c4] sm:$0xf]
    %v204 = vld [vmem:[#allocation2 + $0x1c8] sm:$0xf]
    %v205 = vld [vmem:[#allocation2 + $0x1cc] sm:$0xf]
    %v206 = vld [vmem:[#allocation2 + $0x1d0] sm:$0xf]
    %v207 = vld [vmem:[#allocation2 + $0x1d4] sm:$0xf]
    %v208 = vld [vmem:[#allocation2 + $0x1d8] sm:$0xf]
    %v209 = vld [vmem:[#allocation2 + $0x1dc] sm:$0xf]
    %v210 = vld [vmem:[#allocation2 + $0x1e0] sm:$0xf]
    %v211 = vld [vmem:[#allocation2 + $0x1e4] sm:$0xf]
    %v212 = vld [vmem:[#allocation2 + $0x1e8] sm:$0xf]
    %v213 = vld [vmem:[#allocation2 + $0x1ec] sm:$0xf]
    %v214 = vld [vmem:[#allocation2 + $0x1f0] sm:$0xf]
    %v215 = vld [vmem:[#allocation2 + $0x1f4] sm:$0xf]
    %v216 = vld [vmem:[#allocation2 + $0x1f8] sm:$0xf]
    %v217 = vld [vmem:[#allocation2 + $0x1fc] sm:$0xf]
    %v218 = vld [vmem:[#allocation2 + $0x200] sm:$0xf]
    %v219 = vld [vmem:[#allocation2 + $0x204] sm:$0xf]
    %v220 = vld [vmem:[#allocation2 + $0x208] sm:$0xf]
    %v221 = vld [vmem:[#allocation2 + $0x20c] sm:$0xf]
    %v222 = vld [vmem:[#allocation2 + $0x210] sm:$0xf]
    %v223 = vld [vmem:[#allocation2 + $0x214] sm:$0xf]
    %v224 = vld [vmem:[#allocation2 + $0x218] sm:$0xf]
    %v225 = vld [vmem:[#allocation2 + $0x21c] sm:$0xf]
    %v226 = vld [vmem:[#allocation2 + $0x220] sm:$0xf]
    %v227 = vld [vmem:[#allocation2 + $0x224] sm:$0xf]
    %v228 = vld [vmem:[#allocation2 + $0x228] sm:$0xf]
    %v229 = vld [vmem:[#allocation2 + $0x22c] sm:$0xf]
    %v230 = vld [vmem:[#allocation2 + $0x230] sm:$0xf]
    %v231 = vld [vmem:[#allocation2 + $0x234] sm:$0xf]
    %v232 = vld [vmem:[#allocation2 + $0x238] sm:$0xf]
    %v233 = vld [vmem:[#allocation2 + $0x23c] sm:$0xf]
    %v234 = vld [vmem:[#allocation2 + $0x240] sm:$0xf]
    %v235 = vld [vmem:[#allocation2 + $0x244] sm:$0xf]
    %v236 = vld [vmem:[#allocation2 + $0x248] sm:$0xf]
    %v237 = vld [vmem:[#allocation2 + $0x24c] sm:$0xf]
    %v238 = vld [vmem:[#allocation2 + $0x250] sm:$0xf]
    %v239 = vld [vmem:[#allocation2 + $0x254] sm:$0xf]
    %v240 = vld [vmem:[#allocation2 + $0x258] sm:$0xf]
    %v241 = vld [vmem:[#allocation2 + $0x25c] sm:$0xf]
    %v242 = vld [vmem:[#allocation2 + $0x260] sm:$0xf]
    %v243 = vld [vmem:[#allocation2 + $0x264] sm:$0xf]
    %v244 = vld [vmem:[#allocation2 + $0x268] sm:$0xf]
    %v245 = vld [vmem:[#allocation2 + $0x26c] sm:$0xf]
    %v246 = vld [vmem:[#allocation2 + $0x270] sm:$0xf]
    %v247 = vld [vmem:[#allocation2 + $0x274] sm:$0xf]
    %v248 = vld [vmem:[#allocation2 + $0x278] sm:$0xf]
    %v249 = vld [vmem:[#allocation2 + $0x27c] sm:$0xf]
    %v250 = vld [vmem:[#allocation2 + $0x280] sm:$0xf]
    %v251 = vld [vmem:[#allocation2 + $0x284] sm:$0xf]
    %v252 = vld [vmem:[#allocation2 + $0x288] sm:$0xf]
    %v253 = vld [vmem:[#allocation2 + $0x28c] sm:$0xf]
    %v254 = vld [vmem:[#allocation2 + $0x290] sm:$0xf]
    %v255 = vld [vmem:[#allocation2 + $0x294] sm:$0xf]
    %v256 = vld [vmem:[#allocation2 + $0x298] sm:$0xf]
    %v257 = vld [vmem:[#allocation2 + $0x29c] sm:$0xf]
    %v258 = vld [vmem:[#allocation2 + $0x2a0] sm:$0xf]
    %v259 = vld [vmem:[#allocation2 + $0x2a4] sm:$0xf]
    %v260 = vld [vmem:[#allocation2 + $0x2a8] sm:$0xf]
    %v261 = vld [vmem:[#allocation2 + $0x2ac] sm:$0xf]
    %v262 = vld [vmem:[#allocation2 + $0x2b0] sm:$0xf]
    %v263 = vld [vmem:[#allocation2 + $0x2b4] sm:$0xf]
    %v264 = vld [vmem:[#allocation2 + $0x2b8] sm:$0xf]
    %v265 = vld [vmem:[#allocation2 + $0x2bc] sm:$0xf]
    %v266 = vld [vmem:[#allocation2 + $0x2c0] sm:$0xf]
    %v267 = vld [vmem:[#allocation2 + $0x2c4] sm:$0xf]
    %v268 = vld [vmem:[#allocation2 + $0x2c8] sm:$0xf]
    %v269 = vld [vmem:[#allocation2 + $0x2cc] sm:$0xf]
    %v270 = vld [vmem:[#allocation2 + $0x2d0] sm:$0xf]
    %v271 = vld [vmem:[#allocation2 + $0x2d4] sm:$0xf]
    %v272 = vld [vmem:[#allocation2 + $0x2d8] sm:$0xf]
    %v273 = vld [vmem:[#allocation2 + $0x2dc] sm:$0xf]
    %v274 = vld [vmem:[#allocation2 + $0x2e0] sm:$0xf]
    %v275 = vld [vmem:[#allocation2 + $0x2e4] sm:$0xf]
    %v276 = vld [vmem:[#allocation2 + $0x2e8] sm:$0xf]
    %v277 = vld [vmem:[#allocation2 + $0x2ec] sm:$0xf]
    %v278 = vld [vmem:[#allocation2 + $0x2f0] sm:$0xf]
    %v279 = vld [vmem:[#allocation2 + $0x2f4] sm:$0xf]
    %v280 = vld [vmem:[#allocation2 + $0x2f8] sm:$0xf]
    %v281 = vld [vmem:[#allocation2 + $0x2fc] sm:$0xf]
    %v282 = vld [vmem:[#allocation2 + $0x300] sm:$0xf]
    %v283 = vld [vmem:[#allocation2 + $0x304] sm:$0xf]
    %v284 = vld [vmem:[#allocation2 + $0x308] sm:$0xf]
    %v285 = vld [vmem:[#allocation2 + $0x30c] sm:$0xf]
    %v286 = vld [vmem:[#allocation2 + $0x310] sm:$0xf]
    %v287 = vld [vmem:[#allocation2 + $0x314] sm:$0xf]
    %v288 = vld [vmem:[#allocation2 + $0x318] sm:$0xf]
    %v289 = vld [vmem:[#allocation2 + $0x31c] sm:$0xf]
    %v290 = vld [vmem:[#allocation2 + $0x320] sm:$0xf]
    %v291 = vld [vmem:[#allocation2 + $0x324] sm:$0xf]
    %v292 = vld [vmem:[#allocation2 + $0x328] sm:$0xf]
    %v293 = vld [vmem:[#allocation2 + $0x32c] sm:$0xf]
    %v294 = vld [vmem:[#allocation2 + $0x330] sm:$0xf]
    %v295 = vld [vmem:[#allocation2 + $0x334] sm:$0xf]
    %v296 = vld [vmem:[#allocation2 + $0x338] sm:$0xf]
    %v297 = vld [vmem:[#allocation2 + $0x33c] sm:$0xf]
    %v298 = vld [vmem:[#allocation2 + $0x340] sm:$0xf]
    %v299 = vld [vmem:[#allocation2 + $0x344] sm:$0xf]
    %v300 = vld [vmem:[#allocation2 + $0x348] sm:$0xf]
    %v301 = vld [vmem:[#allocation2 + $0x34c] sm:$0xf]
    %v302 = vld [vmem:[#allocation2 + $0x350] sm:$0xf]
    %v303 = vld [vmem:[#allocation2 + $0x354] sm:$0xf]
    %v304 = vld [vmem:[#allocation2 + $0x358] sm:$0xf]
    %v305 = vld [vmem:[#allocation2 + $0x35c] sm:$0xf]
    %v306 = vld [vmem:[#allocation2 + $0x360] sm:$0xf]
    %v307 = vld [vmem:[#allocation2 + $0x364] sm:$0xf]
    %v308 = vld [vmem:[#allocation2 + $0x368] sm:$0xf]
    %v309 = vld [vmem:[#allocation2 + $0x36c] sm:$0xf]
    %v310 = vld [vmem:[#allocation2 + $0x370] sm:$0xf]
    %v311 = vld [vmem:[#allocation2 + $0x374] sm:$0xf]
    %v312 = vld [vmem:[#allocation2 + $0x378] sm:$0xf]
    %v313 = vld [vmem:[#allocation2 + $0x37c] sm:$0xf]
    %v314 = vld [vmem:[#allocation2 + $0x380] sm:$0xf]
    %v315 = vld [vmem:[#allocation2 + $0x384] sm:$0xf]
    %v316 = vld [vmem:[#allocation2 + $0x388] sm:$0xf]
    %v317 = vld [vmem:[#allocation2 + $0x38c] sm:$0xf]
    %v318 = vld [vmem:[#allocation2 + $0x390] sm:$0xf]
    %v319 = vld [vmem:[#allocation2 + $0x394] sm:$0xf]
    %v320 = vld [vmem:[#allocation2 + $0x398] sm:$0xf]
    %v321 = vld [vmem:[#allocation2 + $0x39c] sm:$0xf]
    %v322 = vld [vmem:[#allocation2 + $0x3a0] sm:$0xf]
    %v323 = vld [vmem:[#allocation2 + $0x3a4] sm:$0xf]
    %v324 = vld [vmem:[#allocation2 + $0x3a8] sm:$0xf]
    %v325 = vld [vmem:[#allocation2 + $0x3ac] sm:$0xf]
    %v326 = vld [vmem:[#allocation2 + $0x3b0] sm:$0xf]
    %v327 = vld [vmem:[#allocation2 + $0x3b4] sm:$0xf]
    %v328 = vld [vmem:[#allocation2 + $0x3b8] sm:$0xf]
    %v329 = vld [vmem:[#allocation2 + $0x3bc] sm:$0xf]
    %v330 = vld [vmem:[#allocation2 + $0x3c0] sm:$0xf]
    %v331 = vld [vmem:[#allocation2 + $0x3c4] sm:$0xf]
    %v332 = vld [vmem:[#allocation2 + $0x3c8] sm:$0xf]
    %v333 = vld [vmem:[#allocation2 + $0x3cc] sm:$0xf]
    %v334 = vld [vmem:[#allocation2 + $0x3d0] sm:$0xf]
    %v335 = vld [vmem:[#allocation2 + $0x3d4] sm:$0xf]
    %v336 = vld [vmem:[#allocation2 + $0x3d8] sm:$0xf]
    %v337 = vld [vmem:[#allocation2 + $0x3dc] sm:$0xf]
    %v338 = vld [vmem:[#allocation2 + $0x3e0] sm:$0xf]
    %v339 = vld [vmem:[#allocation2 + $0x3e4] sm:$0xf]
    %v340 = vld [vmem:[#allocation2 + $0x3e8] sm:$0xf]
    %v341 = vld [vmem:[#allocation2 + $0x3ec] sm:$0xf]
    %v342 = vld [vmem:[#allocation2 + $0x3f0] sm:$0xf]
    %v343 = vld [vmem:[#allocation2 + $0x3f4] sm:$0xf]
    %v344 = vld [vmem:[#allocation2 + $0x3f8] sm:$0xf]
    %v345 = vld [vmem:[#allocation2 + $0x3fc] sm:$0xf]
    %v346 = vld [vmem:[#allocation2 + $0x400] sm:$0xf]
    %v347 = vld [vmem:[#allocation2 + $0x404] sm:$0xf]
    %v348 = vld [vmem:[#allocation2 + $0x408] sm:$0xf]
    %v349 = vld [vmem:[#allocation2 + $0x40c] sm:$0xf]
    %v350 = vld [vmem:[#allocation2 + $0x410] sm:$0xf]
    %v351 = vld [vmem:[#allocation2 + $0x414] sm:$0xf]
    %v352 = vld [vmem:[#allocation2 + $0x418] sm:$0xf]
    %v353 = vld [vmem:[#allocation2 + $0x41c] sm:$0xf]
    %v354 = vld [vmem:[#allocation2 + $0x420] sm:$0xf]
    %v355 = vld [vmem:[#allocation2 + $0x424] sm:$0xf]
    %v356 = vld [vmem:[#allocation2 + $0x428] sm:$0xf]
    %v357 = vld [vmem:[#allocation2 + $0x42c] sm:$0xf]
    %v358 = vld [vmem:[#allocation2 + $0x430] sm:$0xf]
    %v359 = vld [vmem:[#allocation2 + $0x434] sm:$0xf]
    %v360 = vld [vmem:[#allocation2 + $0x438] sm:$0xf]
    %v361 = vld [vmem:[#allocation2 + $0x43c] sm:$0xf]
    %v362 = vld [vmem:[#allocation2 + $0x440] sm:$0xf]
    %v363 = vld [vmem:[#allocation2 + $0x444] sm:$0xf]
    %v364 = vld [vmem:[#allocation2 + $0x448] sm:$0xf]
    %v365 = vld [vmem:[#allocation2 + $0x44c] sm:$0xf]
    %v366 = vld [vmem:[#allocation2 + $0x450] sm:$0xf]
    %v367 = vld [vmem:[#allocation2 + $0x454] sm:$0xf]
    %v368 = vld [vmem:[#allocation2 + $0x458] sm:$0xf]
    %v369 = vld [vmem:[#allocation2 + $0x45c] sm:$0xf]
    %v370 = vld [vmem:[#allocation2 + $0x460] sm:$0xf]
    %v371 = vld [vmem:[#allocation2 + $0x464] sm:$0xf]
    %v372 = vld [vmem:[#allocation2 + $0x468] sm:$0xf]
    %v373 = vld [vmem:[#allocation2 + $0x46c] sm:$0xf]
    %v374 = vld [vmem:[#allocation2 + $0x470] sm:$0xf]
    %v375 = vld [vmem:[#allocation2 + $0x474] sm:$0xf]
    %v376 = vld [vmem:[#allocation2 + $0x478] sm:$0xf]
    %v377 = vld [vmem:[#allocation2 + $0x47c] sm:$0xf]
    %v378 = vld [vmem:[#allocation2 + $0x480] sm:$0xf]
    %v379 = vld [vmem:[#allocation2 + $0x484] sm:$0xf]
    %v380 = vld [vmem:[#allocation2 + $0x488] sm:$0xf]
    %v381 = vld [vmem:[#allocation2 + $0x48c] sm:$0xf]
    %v382 = vld [vmem:[#allocation2 + $0x490] sm:$0xf]
    %v383 = vld [vmem:[#allocation2 + $0x494] sm:$0xf]
    %v384 = vld [vmem:[#allocation2 + $0x498] sm:$0xf]
    %v385 = vld [vmem:[#allocation2 + $0x49c] sm:$0xf]
    %v386 = vld [vmem:[#allocation2 + $0x4a0] sm:$0xf]
    %v387 = vld [vmem:[#allocation2 + $0x4a4] sm:$0xf]
    %v388 = vld [vmem:[#allocation2 + $0x4a8] sm:$0xf]
    %v389 = vld [vmem:[#allocation2 + $0x4ac] sm:$0xf]
    %v390 = vld [vmem:[#allocation2 + $0x4b0] sm:$0xf]
    %v391 = vld [vmem:[#allocation2 + $0x4b4] sm:$0xf]
    %v392 = vld [vmem:[#allocation2 + $0x4b8] sm:$0xf]
    %v393 = vld [vmem:[#allocation2 + $0x4bc] sm:$0xf]
    %v394 = vld [vmem:[#allocation2 + $0x4c0] sm:$0xf]
    %v395 = vld [vmem:[#allocation2 + $0x4c4] sm:$0xf]
    %v396 = vld [vmem:[#allocation2 + $0x4c8] sm:$0xf]
    %v397 = vld [vmem:[#allocation2 + $0x4cc] sm:$0xf]
    %v398 = vld [vmem:[#allocation2 + $0x4d0] sm:$0xf]
    %v399 = vld [vmem:[#allocation2 + $0x4d4] sm:$0xf]
    %v400 = vld [vmem:[#allocation2 + $0x4d8] sm:$0xf]
    %v401 = vld [vmem:[#allocation2 + $0x4dc] sm:$0xf]
    %v402 = vld [vmem:[#allocation2 + $0x4e0] sm:$0xf]
    %v403 = vld [vmem:[#allocation2 + $0x4e4] sm:$0xf]
    %v404 = vld [vmem:[#allocation2 + $0x4e8] sm:$0xf]
    %v405 = vld [vmem:[#allocation2 + $0x4ec] sm:$0xf]
    %v406 = vld [vmem:[#allocation2 + $0x4f0] sm:$0xf]
    %v407 = vld [vmem:[#allocation2 + $0x4f4] sm:$0xf]
    %v408 = vld [vmem:[#allocation2 + $0x4f8] sm:$0xf]
    %v409 = vld [vmem:[#allocation2 + $0x4fc] sm:$0xf]
    %v410 = vld [vmem:[%s2] sm:$0x1]
    %v412 = vlaneseq
    %v413 = vshrl.u32 %v412, 7
    %v414 = vsub.s32 0, %v413
    %v415 = vrot.slane %v410, %v414
    %v427 = vunpack.c.l.b16 %v80
    %v428 = vunpack.c.h.b16 %v80
    %v429 = vunpack.c.l.b16 %v81
    %v430 = vunpack.c.h.b16 %v81
    %v431 = vunpack.c.l.b16 %v82
    %v432 = vunpack.c.h.b16 %v82
    %v433 = vunpack.c.l.b16 %v83
    %v434 = vunpack.c.h.b16 %v83
    %v435 = vunpack.c.l.b16 %v84
    %v436 = vunpack.c.h.b16 %v84
    %v437 = vunpack.c.l.b16 %v85
    %v438 = vunpack.c.h.b16 %v85
    %v439 = vunpack.c.l.b16 %v86
    %v440 = vunpack.c.h.b16 %v86
    %v441 = vunpack.c.l.b16 %v87
    %v442 = vunpack.c.h.b16 %v87
    %v443 = vunpack.c.l.b16 %v88
    %v444 = vunpack.c.h.b16 %v88
    %v445 = vunpack.c.l.b16 %v89
    %v446 = vunpack.c.h.b16 %v89
    %v447 = vpack.c.b16 %v427, %v427
    %v448 = vpack.c.b16 %v428, %v428
    %v449 = vpack.c.b16 %v429, %v429
    %v450 = vpack.c.b16 %v430, %v430
    %v451 = vpack.c.b16 %v431, %v431
    %v452 = vpack.c.b16 %v432, %v432
    %v453 = vpack.c.b16 %v433, %v433
    %v454 = vpack.c.b16 %v434, %v434
    %v455 = vpack.c.b16 %v435, %v435
    %v456 = vpack.c.b16 %v436, %v436
    %v457 = vpack.c.b16 %v437, %v437
    %v458 = vpack.c.b16 %v438, %v438
    %v459 = vpack.c.b16 %v439, %v439
    %v460 = vpack.c.b16 %v440, %v440
    %v461 = vpack.c.b16 %v441, %v441
    %v462 = vpack.c.b16 %v442, %v442
    %v463 = vpack.c.b16 %v443, %v443
    %v464 = vpack.c.b16 %v444, %v444
    %v465 = vpack.c.b16 %v445, %v445
    %v466 = vpack.c.b16 %v446, %v446
    %v807 = vunpack.c.l.b16 %v90
    %v808 = vunpack.c.l.b16 %v91
    %v809 = vunpack.c.l.b16 %v92
    %v810 = vunpack.c.l.b16 %v93
    %v811 = vunpack.c.l.b16 %v94
    %v812 = vunpack.c.l.b16 %v95
    %v813 = vunpack.c.l.b16 %v96
    %v814 = vunpack.c.l.b16 %v97
    %v815 = vunpack.c.l.b16 %v98
    %v816 = vunpack.c.l.b16 %v99
    %v817 = vunpack.c.l.b16 %v100
    %v818 = vunpack.c.l.b16 %v101
    %v819 = vunpack.c.l.b16 %v102
    %v820 = vunpack.c.l.b16 %v103
    %v821 = vunpack.c.l.b16 %v104
    %v822 = vunpack.c.l.b16 %v105
    %v823 = vunpack.c.l.b16 %v106
    %v824 = vunpack.c.l.b16 %v107
    %v825 = vunpack.c.l.b16 %v108
    %v826 = vunpack.c.l.b16 %v109
    %v827 = vunpack.c.l.b16 %v110
    %v828 = vunpack.c.l.b16 %v111
    %v829 = vunpack.c.l.b16 %v112
    %v830 = vunpack.c.l.b16 %v113
    %v831 = vunpack.c.l.b16 %v114
    %v832 = vunpack.c.l.b16 %v115
    %v833 = vunpack.c.l.b16 %v116
    %v834 = vunpack.c.l.b16 %v117
    %v835 = vunpack.c.l.b16 %v118
    %v836 = vunpack.c.l.b16 %v119
    %v837 = vunpack.c.l.b16 %v120
    %v838 = vunpack.c.l.b16 %v121
    %v839 = vunpack.c.l.b16 %v122
    %v840 = vunpack.c.l.b16 %v123
    %v841 = vunpack.c.l.b16 %v124
    %v842 = vunpack.c.l.b16 %v125
    %v843 = vunpack.c.l.b16 %v126
    %v844 = vunpack.c.l.b16 %v127
    %v845 = vunpack.c.l.b16 %v128
    %v846 = vunpack.c.l.b16 %v129
    %v847 = vunpack.c.l.b16 %v130
    %v848 = vunpack.c.l.b16 %v131
    %v849 = vunpack.c.l.b16 %v132
    %v850 = vunpack.c.l.b16 %v133
    %v851 = vunpack.c.l.b16 %v134
    %v852 = vunpack.c.l.b16 %v135
    %v853 = vunpack.c.l.b16 %v136
    %v854 = vunpack.c.l.b16 %v137
    %v855 = vunpack.c.l.b16 %v138
    %v856 = vunpack.c.l.b16 %v139
    %v857 = vunpack.c.l.b16 %v140
    %v858 = vunpack.c.l.b16 %v141
    %v859 = vunpack.c.l.b16 %v142
    %v860 = vunpack.c.l.b16 %v143
    %v861 = vunpack.c.l.b16 %v144
    %v862 = vunpack.c.l.b16 %v145
    %v863 = vunpack.c.l.b16 %v146
    %v864 = vunpack.c.l.b16 %v147
    %v865 = vunpack.c.l.b16 %v148
    %v866 = vunpack.c.l.b16 %v149
    %v867 = vunpack.c.l.b16 %v150
    %v868 = vunpack.c.l.b16 %v151
    %v869 = vunpack.c.l.b16 %v152
    %v870 = vunpack.c.l.b16 %v153
    %v871 = vunpack.c.l.b16 %v154
    %v872 = vunpack.c.l.b16 %v155
    %v873 = vunpack.c.l.b16 %v156
    %v874 = vunpack.c.l.b16 %v157
    %v875 = vunpack.c.l.b16 %v158
    %v876 = vunpack.c.l.b16 %v159
    %v877 = vunpack.c.l.b16 %v160
    %v878 = vunpack.c.l.b16 %v161
    %v879 = vunpack.c.l.b16 %v162
    %v880 = vunpack.c.l.b16 %v163
    %v881 = vunpack.c.l.b16 %v164
    %v882 = vunpack.c.l.b16 %v165
    %v883 = vunpack.c.l.b16 %v166
    %v884 = vunpack.c.l.b16 %v167
    %v885 = vunpack.c.l.b16 %v168
    %v886 = vunpack.c.l.b16 %v169
    %v887 = vunpack.c.l.b16 %v170
    %v888 = vunpack.c.l.b16 %v171
    %v889 = vunpack.c.l.b16 %v172
    %v890 = vunpack.c.l.b16 %v173
    %v891 = vunpack.c.l.b16 %v174
    %v892 = vunpack.c.l.b16 %v175
    %v893 = vunpack.c.l.b16 %v176
    %v894 = vunpack.c.l.b16 %v177
    %v895 = vunpack.c.l.b16 %v178
    %v896 = vunpack.c.l.b16 %v179
    %v897 = vunpack.c.l.b16 %v180
    %v898 = vunpack.c.l.b16 %v181
    %v899 = vunpack.c.l.b16 %v182
    %v900 = vunpack.c.l.b16 %v183
    %v901 = vunpack.c.l.b16 %v184
    %v902 = vunpack.c.l.b16 %v185
    %v903 = vunpack.c.l.b16 %v186
    %v904 = vunpack.c.l.b16 %v187
    %v905 = vunpack.c.l.b16 %v188
    %v906 = vunpack.c.l.b16 %v189
    %v907 = vunpack.c.l.b16 %v190
    %v908 = vunpack.c.l.b16 %v191
    %v909 = vunpack.c.l.b16 %v192
    %v910 = vunpack.c.l.b16 %v193
    %v911 = vunpack.c.l.b16 %v194
    %v912 = vunpack.c.l.b16 %v195
    %v913 = vunpack.c.l.b16 %v196
    %v914 = vunpack.c.l.b16 %v197
    %v915 = vunpack.c.l.b16 %v198
    %v916 = vunpack.c.l.b16 %v199
    %v917 = vunpack.c.l.b16 %v200
    %v918 = vunpack.c.l.b16 %v201
    %v919 = vunpack.c.l.b16 %v202
    %v920 = vunpack.c.l.b16 %v203
    %v921 = vunpack.c.l.b16 %v204
    %v922 = vunpack.c.l.b16 %v205
    %v923 = vunpack.c.l.b16 %v206
    %v924 = vunpack.c.l.b16 %v207
    %v925 = vunpack.c.l.b16 %v208
    %v926 = vunpack.c.l.b16 %v209
    %v927 = vunpack.c.l.b16 %v210
    %v928 = vunpack.c.l.b16 %v211
    %v929 = vunpack.c.l.b16 %v212
    %v930 = vunpack.c.l.b16 %v213
    %v931 = vunpack.c.l.b16 %v214
    %v932 = vunpack.c.l.b16 %v215
    %v933 = vunpack.c.l.b16 %v216
    %v934 = vunpack.c.l.b16 %v217
    %v935 = vunpack.c.l.b16 %v218
    %v936 = vunpack.c.l.b16 %v219
    %v937 = vunpack.c.l.b16 %v220
    %v938 = vunpack.c.l.b16 %v221
    %v939 = vunpack.c.l.b16 %v222
    %v940 = vunpack.c.l.b16 %v223
    %v941 = vunpack.c.l.b16 %v224
    %v942 = vunpack.c.l.b16 %v225
    %v943 = vunpack.c.l.b16 %v226
    %v944 = vunpack.c.l.b16 %v227
    %v945 = vunpack.c.l.b16 %v228
    %v946 = vunpack.c.l.b16 %v229
    %v947 = vunpack.c.l.b16 %v230
    %v948 = vunpack.c.l.b16 %v231
    %v949 = vunpack.c.l.b16 %v232
    %v950 = vunpack.c.l.b16 %v233
    %v951 = vunpack.c.l.b16 %v234
    %v952 = vunpack.c.l.b16 %v235
    %v953 = vunpack.c.l.b16 %v236
    %v954 = vunpack.c.l.b16 %v237
    %v955 = vunpack.c.l.b16 %v238
    %v956 = vunpack.c.l.b16 %v239
    %v957 = vunpack.c.l.b16 %v240
    %v958 = vunpack.c.l.b16 %v241
    %v959 = vunpack.c.l.b16 %v242
    %v960 = vunpack.c.l.b16 %v243
    %v961 = vunpack.c.l.b16 %v244
    %v962 = vunpack.c.l.b16 %v245
    %v963 = vunpack.c.l.b16 %v246
    %v964 = vunpack.c.l.b16 %v247
    %v965 = vunpack.c.l.b16 %v248
    %v966 = vunpack.c.l.b16 %v249
    %v967 = vunpack.c.l.b16 %v250
    %v968 = vunpack.c.l.b16 %v251
    %v969 = vunpack.c.l.b16 %v252
    %v970 = vunpack.c.l.b16 %v253
    %v971 = vunpack.c.l.b16 %v254
    %v972 = vunpack.c.l.b16 %v255
    %v973 = vunpack.c.l.b16 %v256
    %v974 = vunpack.c.l.b16 %v257
    %v975 = vunpack.c.l.b16 %v258
    %v976 = vunpack.c.l.b16 %v259
    %v977 = vunpack.c.l.b16 %v260
    %v978 = vunpack.c.l.b16 %v261
    %v979 = vunpack.c.l.b16 %v262
    %v980 = vunpack.c.l.b16 %v263
    %v981 = vunpack.c.l.b16 %v264
    %v982 = vunpack.c.l.b16 %v265
    %v983 = vunpack.c.l.b16 %v266
    %v984 = vunpack.c.l.b16 %v267
    %v985 = vunpack.c.l.b16 %v268
    %v986 = vunpack.c.l.b16 %v269
    %v987 = vunpack.c.l.b16 %v270
    %v988 = vunpack.c.l.b16 %v271
    %v989 = vunpack.c.l.b16 %v272
    %v990 = vunpack.c.l.b16 %v273
    %v991 = vunpack.c.l.b16 %v274
    %v992 = vunpack.c.l.b16 %v275
    %v993 = vunpack.c.l.b16 %v276
    %v994 = vunpack.c.l.b16 %v277
    %v995 = vunpack.c.l.b16 %v278
    %v996 = vunpack.c.l.b16 %v279
    %v997 = vunpack.c.l.b16 %v280
    %v998 = vunpack.c.l.b16 %v281
    %v999 = vunpack.c.l.b16 %v282
    %v1000 = vunpack.c.l.b16 %v283
    %v1001 = vunpack.c.l.b16 %v284
    %v1002 = vunpack.c.l.b16 %v285
    %v1003 = vunpack.c.l.b16 %v286
    %v1004 = vunpack.c.l.b16 %v287
    %v1005 = vunpack.c.l.b16 %v288
    %v1006 = vunpack.c.l.b16 %v289
    %v1007 = vunpack.c.l.b16 %v290
    %v1008 = vunpack.c.l.b16 %v291
    %v1009 = vunpack.c.l.b16 %v292
    %v1010 = vunpack.c.l.b16 %v293
    %v1011 = vunpack.c.l.b16 %v294
    %v1012 = vunpack.c.l.b16 %v295
    %v1013 = vunpack.c.l.b16 %v296
    %v1014 = vunpack.c.l.b16 %v297
    %v1015 = vunpack.c.l.b16 %v298
    %v1016 = vunpack.c.l.b16 %v299
    %v1017 = vunpack.c.l.b16 %v300
    %v1018 = vunpack.c.l.b16 %v301
    %v1019 = vunpack.c.l.b16 %v302
    %v1020 = vunpack.c.l.b16 %v303
    %v1021 = vunpack.c.l.b16 %v304
    %v1022 = vunpack.c.l.b16 %v305
    %v1023 = vunpack.c.l.b16 %v306
    %v1024 = vunpack.c.l.b16 %v307
    %v1025 = vunpack.c.l.b16 %v308
    %v1026 = vunpack.c.l.b16 %v309
    %v1027 = vunpack.c.l.b16 %v310
    %v1028 = vunpack.c.l.b16 %v311
    %v1029 = vunpack.c.l.b16 %v312
    %v1030 = vunpack.c.l.b16 %v313
    %v1031 = vunpack.c.l.b16 %v314
    %v1032 = vunpack.c.l.b16 %v315
    %v1033 = vunpack.c.l.b16 %v316
    %v1034 = vunpack.c.l.b16 %v317
    %v1035 = vunpack.c.l.b16 %v318
    %v1036 = vunpack.c.l.b16 %v319
    %v1037 = vunpack.c.l.b16 %v320
    %v1038 = vunpack.c.l.b16 %v321
    %v1039 = vunpack.c.l.b16 %v322
    %v1040 = vunpack.c.l.b16 %v323
    %v1041 = vunpack.c.l.b16 %v324
    %v1042 = vunpack.c.l.b16 %v325
    %v1043 = vunpack.c.l.b16 %v326
    %v1044 = vunpack.c.l.b16 %v327
    %v1045 = vunpack.c.l.b16 %v328
    %v1046 = vunpack.c.l.b16 %v329
    %v1047 = vunpack.c.l.b16 %v330
    %v1048 = vunpack.c.l.b16 %v331
    %v1049 = vunpack.c.l.b16 %v332
    %v1050 = vunpack.c.l.b16 %v333
    %v1051 = vunpack.c.l.b16 %v334
    %v1052 = vunpack.c.l.b16 %v335
    %v1053 = vunpack.c.l.b16 %v336
    %v1054 = vunpack.c.l.b16 %v337
    %v1055 = vunpack.c.l.b16 %v338
    %v1056 = vunpack.c.l.b16 %v339
    %v1057 = vunpack.c.l.b16 %v340
    %v1058 = vunpack.c.l.b16 %v341
    %v1059 = vunpack.c.l.b16 %v342
    %v1060 = vunpack.c.l.b16 %v343
    %v1061 = vunpack.c.l.b16 %v344
    %v1062 = vunpack.c.l.b16 %v345
    %v1063 = vunpack.c.l.b16 %v346
    %v1064 = vunpack.c.l.b16 %v347
    %v1065 = vunpack.c.l.b16 %v348
    %v1066 = vunpack.c.l.b16 %v349
    %v1067 = vunpack.c.l.b16 %v350
    %v1068 = vunpack.c.l.b16 %v351
    %v1069 = vunpack.c.l.b16 %v352
    %v1070 = vunpack.c.l.b16 %v353
    %v1071 = vunpack.c.l.b16 %v354
    %v1072 = vunpack.c.l.b16 %v355
    %v1073 = vunpack.c.l.b16 %v356
    %v1074 = vunpack.c.l.b16 %v357
    %v1075 = vunpack.c.l.b16 %v358
    %v1076 = vunpack.c.l.b16 %v359
    %v1077 = vunpack.c.l.b16 %v360
    %v1078 = vunpack.c.l.b16 %v361
    %v1079 = vunpack.c.l.b16 %v362
    %v1080 = vunpack.c.l.b16 %v363
    %v1081 = vunpack.c.l.b16 %v364
    %v1082 = vunpack.c.l.b16 %v365
    %v1083 = vunpack.c.l.b16 %v366
    %v1084 = vunpack.c.l.b16 %v367
    %v1085 = vunpack.c.l.b16 %v368
    %v1086 = vunpack.c.l.b16 %v369
    %v1087 = vunpack.c.l.b16 %v370
    %v1088 = vunpack.c.l.b16 %v371
    %v1089 = vunpack.c.l.b16 %v372
    %v1090 = vunpack.c.l.b16 %v373
    %v1091 = vunpack.c.l.b16 %v374
    %v1092 = vunpack.c.l.b16 %v375
    %v1093 = vunpack.c.l.b16 %v376
    %v1094 = vunpack.c.l.b16 %v377
    %v1095 = vunpack.c.l.b16 %v378
    %v1096 = vunpack.c.l.b16 %v379
    %v1097 = vunpack.c.l.b16 %v380
    %v1098 = vunpack.c.l.b16 %v381
    %v1099 = vunpack.c.l.b16 %v382
    %v1100 = vunpack.c.l.b16 %v383
    %v1101 = vunpack.c.l.b16 %v384
    %v1102 = vunpack.c.l.b16 %v385
    %v1103 = vunpack.c.l.b16 %v386
    %v1104 = vunpack.c.l.b16 %v387
    %v1105 = vunpack.c.l.b16 %v388
    %v1106 = vunpack.c.l.b16 %v389
    %v1107 = vunpack.c.l.b16 %v390
    %v1108 = vunpack.c.l.b16 %v391
    %v1109 = vunpack.c.l.b16 %v392
    %v1110 = vunpack.c.l.b16 %v393
    %v1111 = vunpack.c.l.b16 %v394
    %v1112 = vunpack.c.l.b16 %v395
    %v1113 = vunpack.c.l.b16 %v396
    %v1114 = vunpack.c.l.b16 %v397
    %v1115 = vunpack.c.l.b16 %v398
    %v1116 = vunpack.c.l.b16 %v399
    %v1117 = vunpack.c.l.b16 %v400
    %v1118 = vunpack.c.l.b16 %v401
    %v1119 = vunpack.c.l.b16 %v402
    %v1120 = vunpack.c.l.b16 %v403
    %v1121 = vunpack.c.l.b16 %v404
    %v1122 = vunpack.c.l.b16 %v405
    %v1123 = vunpack.c.l.b16 %v406
    %v1124 = vunpack.c.l.b16 %v407
    %v1125 = vunpack.c.l.b16 %v408
    %v1126 = vunpack.c.l.b16 %v409
    %v1127 = vpack.c.b16 %v808, %v807
    %v1128 = vpack.c.b16 %v810, %v809
    %v1129 = vpack.c.b16 %v812, %v811
    %v1130 = vpack.c.b16 %v814, %v813
    %v1131 = vpack.c.b16 %v816, %v815
    %v1132 = vpack.c.b16 %v818, %v817
    %v1133 = vpack.c.b16 %v820, %v819
    %v1134 = vpack.c.b16 %v822, %v821
    %v1135 = vpack.c.b16 %v824, %v823
    %v1136 = vpack.c.b16 %v826, %v825
    %v1137 = vpack.c.b16 %v828, %v827
    %v1138 = vpack.c.b16 %v830, %v829
    %v1139 = vpack.c.b16 %v832, %v831
    %v1140 = vpack.c.b16 %v834, %v833
    %v1141 = vpack.c.b16 %v836, %v835
    %v1142 = vpack.c.b16 %v838, %v837
    %v1143 = vpack.c.b16 %v840, %v839
    %v1144 = vpack.c.b16 %v842, %v841
    %v1145 = vpack.c.b16 %v844, %v843
    %v1146 = vpack.c.b16 %v846, %v845
    %v1147 = vpack.c.b16 %v848, %v847
    %v1148 = vpack.c.b16 %v850, %v849
    %v1149 = vpack.c.b16 %v852, %v851
    %v1150 = vpack.c.b16 %v854, %v853
    %v1151 = vpack.c.b16 %v856, %v855
    %v1152 = vpack.c.b16 %v858, %v857
    %v1153 = vpack.c.b16 %v860, %v859
    %v1154 = vpack.c.b16 %v862, %v861
    %v1155 = vpack.c.b16 %v864, %v863
    %v1156 = vpack.c.b16 %v866, %v865
    %v1157 = vpack.c.b16 %v868, %v867
    %v1158 = vpack.c.b16 %v870, %v869
    %v1159 = vpack.c.b16 %v872, %v871
    %v1160 = vpack.c.b16 %v874, %v873
    %v1161 = vpack.c.b16 %v876, %v875
    %v1162 = vpack.c.b16 %v878, %v877
    %v1163 = vpack.c.b16 %v880, %v879
    %v1164 = vpack.c.b16 %v882, %v881
    %v1165 = vpack.c.b16 %v884, %v883
    %v1166 = vpack.c.b16 %v886, %v885
    %v1167 = vpack.c.b16 %v888, %v887
    %v1168 = vpack.c.b16 %v890, %v889
    %v1169 = vpack.c.b16 %v892, %v891
    %v1170 = vpack.c.b16 %v894, %v893
    %v1171 = vpack.c.b16 %v896, %v895
    %v1172 = vpack.c.b16 %v898, %v897
    %v1173 = vpack.c.b16 %v900, %v899
    %v1174 = vpack.c.b16 %v902, %v901
    %v1175 = vpack.c.b16 %v904, %v903
    %v1176 = vpack.c.b16 %v906, %v905
    %v1177 = vpack.c.b16 %v908, %v907
    %v1178 = vpack.c.b16 %v910, %v909
    %v1179 = vpack.c.b16 %v912, %v911
    %v1180 = vpack.c.b16 %v914, %v913
    %v1181 = vpack.c.b16 %v916, %v915
    %v1182 = vpack.c.b16 %v918, %v917
    %v1183 = vpack.c.b16 %v920, %v919
    %v1184 = vpack.c.b16 %v922, %v921
    %v1185 = vpack.c.b16 %v924, %v923
    %v1186 = vpack.c.b16 %v926, %v925
    %v1187 = vpack.c.b16 %v928, %v927
    %v1188 = vpack.c.b16 %v930, %v929
    %v1189 = vpack.c.b16 %v932, %v931
    %v1190 = vpack.c.b16 %v934, %v933
    %v1191 = vpack.c.b16 %v936, %v935
    %v1192 = vpack.c.b16 %v938, %v937
    %v1193 = vpack.c.b16 %v940, %v939
    %v1194 = vpack.c.b16 %v942, %v941
    %v1195 = vpack.c.b16 %v944, %v943
    %v1196 = vpack.c.b16 %v946, %v945
    %v1197 = vpack.c.b16 %v948, %v947
    %v1198 = vpack.c.b16 %v950, %v949
    %v1199 = vpack.c.b16 %v952, %v951
    %v1200 = vpack.c.b16 %v954, %v953
    %v1201 = vpack.c.b16 %v956, %v955
    %v1202 = vpack.c.b16 %v958, %v957
    %v1203 = vpack.c.b16 %v960, %v959
    %v1204 = vpack.c.b16 %v962, %v961
    %v1205 = vpack.c.b16 %v964, %v963
    %v1206 = vpack.c.b16 %v966, %v965
    %v1207 = vpack.c.b16 %v968, %v967
    %v1208 = vpack.c.b16 %v970, %v969
    %v1209 = vpack.c.b16 %v972, %v971
    %v1210 = vpack.c.b16 %v974, %v973
    %v1211 = vpack.c.b16 %v976, %v975
    %v1212 = vpack.c.b16 %v978, %v977
    %v1213 = vpack.c.b16 %v980, %v979
    %v1214 = vpack.c.b16 %v982, %v981
    %v1215 = vpack.c.b16 %v984, %v983
    %v1216 = vpack.c.b16 %v986, %v985
    %v1217 = vpack.c.b16 %v988, %v987
    %v1218 = vpack.c.b16 %v990, %v989
    %v1219 = vpack.c.b16 %v992, %v991
    %v1220 = vpack.c.b16 %v994, %v993
    %v1221 = vpack.c.b16 %v996, %v995
    %v1222 = vpack.c.b16 %v998, %v997
    %v1223 = vpack.c.b16 %v1000, %v999
    %v1224 = vpack.c.b16 %v1002, %v1001
    %v1225 = vpack.c.b16 %v1004, %v1003
    %v1226 = vpack.c.b16 %v1006, %v1005
    %v1227 = vpack.c.b16 %v1008, %v1007
    %v1228 = vpack.c.b16 %v1010, %v1009
    %v1229 = vpack.c.b16 %v1012, %v1011
    %v1230 = vpack.c.b16 %v1014, %v1013
    %v1231 = vpack.c.b16 %v1016, %v1015
    %v1232 = vpack.c.b16 %v1018, %v1017
    %v1233 = vpack.c.b16 %v1020, %v1019
    %v1234 = vpack.c.b16 %v1022, %v1021
    %v1235 = vpack.c.b16 %v1024, %v1023
    %v1236 = vpack.c.b16 %v1026, %v1025
    %v1237 = vpack.c.b16 %v1028, %v1027
    %v1238 = vpack.c.b16 %v1030, %v1029
    %v1239 = vpack.c.b16 %v1032, %v1031
    %v1240 = vpack.c.b16 %v1034, %v1033
    %v1241 = vpack.c.b16 %v1036, %v1035
    %v1242 = vpack.c.b16 %v1038, %v1037
    %v1243 = vpack.c.b16 %v1040, %v1039
    %v1244 = vpack.c.b16 %v1042, %v1041
    %v1245 = vpack.c.b16 %v1044, %v1043
    %v1246 = vpack.c.b16 %v1046, %v1045
    %v1247 = vpack.c.b16 %v1048, %v1047
    %v1248 = vpack.c.b16 %v1050, %v1049
    %v1249 = vpack.c.b16 %v1052, %v1051
    %v1250 = vpack.c.b16 %v1054, %v1053
    %v1251 = vpack.c.b16 %v1056, %v1055
    %v1252 = vpack.c.b16 %v1058, %v1057
    %v1253 = vpack.c.b16 %v1060, %v1059
    %v1254 = vpack.c.b16 %v1062, %v1061
    %v1255 = vpack.c.b16 %v1064, %v1063
    %v1256 = vpack.c.b16 %v1066, %v1065
    %v1257 = vpack.c.b16 %v1068, %v1067
    %v1258 = vpack.c.b16 %v1070, %v1069
    %v1259 = vpack.c.b16 %v1072, %v1071
    %v1260 = vpack.c.b16 %v1074, %v1073
    %v1261 = vpack.c.b16 %v1076, %v1075
    %v1262 = vpack.c.b16 %v1078, %v1077
    %v1263 = vpack.c.b16 %v1080, %v1079
    %v1264 = vpack.c.b16 %v1082, %v1081
    %v1265 = vpack.c.b16 %v1084, %v1083
    %v1266 = vpack.c.b16 %v1086, %v1085
    %v1267 = vpack.c.b16 %v1088, %v1087
    %v1268 = vpack.c.b16 %v1090, %v1089
    %v1269 = vpack.c.b16 %v1092, %v1091
    %v1270 = vpack.c.b16 %v1094, %v1093
    %v1271 = vpack.c.b16 %v1096, %v1095
    %v1272 = vpack.c.b16 %v1098, %v1097
    %v1273 = vpack.c.b16 %v1100, %v1099
    %v1274 = vpack.c.b16 %v1102, %v1101
    %v1275 = vpack.c.b16 %v1104, %v1103
    %v1276 = vpack.c.b16 %v1106, %v1105
    %v1277 = vpack.c.b16 %v1108, %v1107
    %v1278 = vpack.c.b16 %v1110, %v1109
    %v1279 = vpack.c.b16 %v1112, %v1111
    %v1280 = vpack.c.b16 %v1114, %v1113
    %v1281 = vpack.c.b16 %v1116, %v1115
    %v1282 = vpack.c.b16 %v1118, %v1117
    %v1283 = vpack.c.b16 %v1120, %v1119
    %v1284 = vpack.c.b16 %v1122, %v1121
    %v1285 = vpack.c.b16 %v1124, %v1123
    %v1286 = vpack.c.b16 %v1126, %v1125
    %1447 = vmatprep.subr.bf16.mxu0 0
    %1448 = vmatpush1.bf16.msra.mxu0 %v1134
    %1449 = vmatprep.subr.bf16.mxu0 0
    %1450 = vmatpush1.bf16.msra.mxu0 %v1133
    %1451 = vmatprep.subr.bf16.mxu0 0
    %1452 = vmatpush1.bf16.msra.mxu0 %v1132
    %1453 = vmatprep.subr.bf16.mxu0 0
    %1454 = vmatpush1.bf16.msra.mxu0 %v1131
    %1455 = vmatprep.subr.bf16.mxu0 0
    %1456 = vmatpush1.bf16.msra.mxu0 %v1130
    %1457 = vmatprep.subr.bf16.mxu0 0
    %1458 = vmatpush1.bf16.msra.mxu0 %v1129
    %1459 = vmatprep.subr.bf16.mxu0 0
    %1460 = vmatpush1.bf16.msra.mxu0 %v1128
    %1461 = vmatprep.subr.bf16.mxu0 0
    %1462 = vmatpush1.bf16.msra.mxu0 %v1127
    %1463 = vmatprep.subr.bf16.mxu0 0
    %1464 = vmatpush2.bf16.msra.mxu0 %v1142
    %1465 = vmatprep.subr.bf16.mxu0 0
    %1466 = vmatpush2.bf16.msra.mxu0 %v1141
    %1467 = vmatprep.subr.bf16.mxu0 0
    %1468 = vmatpush2.bf16.msra.mxu0 %v1140
    %1469 = vmatprep.subr.bf16.mxu0 0
    %1470 = vmatpush2.bf16.msra.mxu0 %v1139
    %1471 = vmatprep.subr.bf16.mxu0 0
    %1472 = vmatpush2.bf16.msra.mxu0 %v1138
    %1473 = vmatprep.subr.bf16.mxu0 0
    %1474 = vmatpush2.bf16.msra.mxu0 %v1137
    %1475 = vmatprep.subr.bf16.mxu0 0
    %1476 = vmatpush2.bf16.msra.mxu0 %v1136
    %1477 = vmatprep.subr.bf16.mxu0 0
    %1478 = vmatpush2.bf16.msra.mxu0 %v1135
    %1479 = vmatprep.mubr.bf16.mxu0 %v448
    %1480 = vmatmul.mubr.bf16.gmra.mxu0 %v447
    %v1481 = vpop.f32.mrf.mxu0
    %v1482 = vadd.f32 %v415, %v1481
    %v1483 = vpop.f32.mrf.mxu0
    %v1484 = vpop.f32.mrf.mxu0
    %v1485 = vpop.f32.mrf.mxu0
    %1486 = vdwg.mxu0
    %1487 = vmatprep.subr.bf16.mxu0 0
    %1488 = vmatpush1.bf16.msra.mxu0 %v1150
    %1489 = vmatprep.subr.bf16.mxu0 0
    %1490 = vmatpush1.bf16.msra.mxu0 %v1149
    %1491 = vmatprep.subr.bf16.mxu0 0
    %1492 = vmatpush1.bf16.msra.mxu0 %v1148
    %1493 = vmatprep.subr.bf16.mxu0 0
    %1494 = vmatpush1.bf16.msra.mxu0 %v1147
    %1495 = vmatprep.subr.bf16.mxu0 0
    %1496 = vmatpush1.bf16.msra.mxu0 %v1146
    %1497 = vmatprep.subr.bf16.mxu0 0
    %1498 = vmatpush1.bf16.msra.mxu0 %v1145
    %1499 = vmatprep.subr.bf16.mxu0 0
    %1500 = vmatpush1.bf16.msra.mxu0 %v1144
    %1501 = vmatprep.subr.bf16.mxu0 0
    %1502 = vmatpush1.bf16.msra.mxu0 %v1143
    %1503 = vmatprep.subr.bf16.mxu0 0
    %1504 = vmatpush2.bf16.msra.mxu0 %v1158
    %1505 = vmatprep.subr.bf16.mxu0 0
    %1506 = vmatpush2.bf16.msra.mxu0 %v1157
    %1507 = vmatprep.subr.bf16.mxu0 0
    %1508 = vmatpush2.bf16.msra.mxu0 %v1156
    %1509 = vmatprep.subr.bf16.mxu0 0
    %1510 = vmatpush2.bf16.msra.mxu0 %v1155
    %1511 = vmatprep.subr.bf16.mxu0 0
    %1512 = vmatpush2.bf16.msra.mxu0 %v1154
    %1513 = vmatprep.subr.bf16.mxu0 0
    %1514 = vmatpush2.bf16.msra.mxu0 %v1153
    %1515 = vmatprep.subr.bf16.mxu0 0
    %1516 = vmatpush2.bf16.msra.mxu0 %v1152
    %1517 = vmatprep.subr.bf16.mxu0 0
    %1518 = vmatpush2.bf16.msra.mxu0 %v1151
    %1519 = vmatprep.mubr.bf16.mxu0 %v450
    %1520 = vmatmul.mubr.bf16.gmra.mxu0 %v449
    %v1521 = vpop.f32.mrf.mxu0
    %v1522 = vadd.f32 %v1482, %v1521
    %v1523 = vpop.f32.mrf.mxu0
    %v1524 = vpop.f32.mrf.mxu0
    %v1525 = vpop.f32.mrf.mxu0
    %1526 = vdwg.mxu0
    %1527 = vmatprep.subr.bf16.mxu0 0
    %1528 = vmatpush1.bf16.msra.mxu0 %v1166
    %1529 = vmatprep.subr.bf16.mxu0 0
    %1530 = vmatpush1.bf16.msra.mxu0 %v1165
    %1531 = vmatprep.subr.bf16.mxu0 0
    %1532 = vmatpush1.bf16.msra.mxu0 %v1164
    %1533 = vmatprep.subr.bf16.mxu0 0
    %1534 = vmatpush1.bf16.msra.mxu0 %v1163
    %1535 = vmatprep.subr.bf16.mxu0 0
    %1536 = vmatpush1.bf16.msra.mxu0 %v1162
    %1537 = vmatprep.subr.bf16.mxu0 0
    %1538 = vmatpush1.bf16.msra.mxu0 %v1161
    %1539 = vmatprep.subr.bf16.mxu0 0
    %1540 = vmatpush1.bf16.msra.mxu0 %v1160
    %1541 = vmatprep.subr.bf16.mxu0 0
    %1542 = vmatpush1.bf16.msra.mxu0 %v1159
    %1543 = vmatprep.subr.bf16.mxu0 0
    %1544 = vmatpush2.bf16.msra.mxu0 %v1174
    %1545 = vmatprep.subr.bf16.mxu0 0
    %1546 = vmatpush2.bf16.msra.mxu0 %v1173
    %1547 = vmatprep.subr.bf16.mxu0 0
    %1548 = vmatpush2.bf16.msra.mxu0 %v1172
    %1549 = vmatprep.subr.bf16.mxu0 0
    %1550 = vmatpush2.bf16.msra.mxu0 %v1171
    %1551 = vmatprep.subr.bf16.mxu0 0
    %1552 = vmatpush2.bf16.msra.mxu0 %v1170
    %1553 = vmatprep.subr.bf16.mxu0 0
    %1554 = vmatpush2.bf16.msra.mxu0 %v1169
    %1555 = vmatprep.subr.bf16.mxu0 0
    %1556 = vmatpush2.bf16.msra.mxu0 %v1168
    %1557 = vmatprep.subr.bf16.mxu0 0
    %1558 = vmatpush2.bf16.msra.mxu0 %v1167
    %1559 = vmatprep.mubr.bf16.mxu0 %v452
    %1560 = vmatmul.mubr.bf16.gmra.mxu0 %v451
    %v1561 = vpop.f32.mrf.mxu0
    %v1562 = vadd.f32 %v1522, %v1561
    %v1563 = vpop.f32.mrf.mxu0
    %v1564 = vpop.f32.mrf.mxu0
    %v1565 = vpop.f32.mrf.mxu0
    %1566 = vdwg.mxu0
    %1567 = vmatprep.subr.bf16.mxu0 0
    %1568 = vmatpush1.bf16.msra.mxu0 %v1182
    %1569 = vmatprep.subr.bf16.mxu0 0
    %1570 = vmatpush1.bf16.msra.mxu0 %v1181
    %1571 = vmatprep.subr.bf16.mxu0 0
    %1572 = vmatpush1.bf16.msra.mxu0 %v1180
    %1573 = vmatprep.subr.bf16.mxu0 0
    %1574 = vmatpush1.bf16.msra.mxu0 %v1179
    %1575 = vmatprep.subr.bf16.mxu0 0
    %1576 = vmatpush1.bf16.msra.mxu0 %v1178
    %1577 = vmatprep.subr.bf16.mxu0 0
    %1578 = vmatpush1.bf16.msra.mxu0 %v1177
    %1579 = vmatprep.subr.bf16.mxu0 0
    %1580 = vmatpush1.bf16.msra.mxu0 %v1176
    %1581 = vmatprep.subr.bf16.mxu0 0
    %1582 = vmatpush1.bf16.msra.mxu0 %v1175
    %1583 = vmatprep.subr.bf16.mxu0 0
    %1584 = vmatpush2.bf16.msra.mxu0 %v1190
    %1585 = vmatprep.subr.bf16.mxu0 0
    %1586 = vmatpush2.bf16.msra.mxu0 %v1189
    %1587 = vmatprep.subr.bf16.mxu0 0
    %1588 = vmatpush2.bf16.msra.mxu0 %v1188
    %1589 = vmatprep.subr.bf16.mxu0 0
    %1590 = vmatpush2.bf16.msra.mxu0 %v1187
    %1591 = vmatprep.subr.bf16.mxu0 0
    %1592 = vmatpush2.bf16.msra.mxu0 %v1186
    %1593 = vmatprep.subr.bf16.mxu0 0
    %1594 = vmatpush2.bf16.msra.mxu0 %v1185
    %1595 = vmatprep.subr.bf16.mxu0 0
    %1596 = vmatpush2.bf16.msra.mxu0 %v1184
    %1597 = vmatprep.subr.bf16.mxu0 0
    %1598 = vmatpush2.bf16.msra.mxu0 %v1183
    %1599 = vmatprep.mubr.bf16.mxu0 %v454
    %1600 = vmatmul.mubr.bf16.gmra.mxu0 %v453
    %v1601 = vpop.f32.mrf.mxu0
    %v1602 = vadd.f32 %v1562, %v1601
    %v1603 = vpop.f32.mrf.mxu0
    %v1604 = vpop.f32.mrf.mxu0
    %v1605 = vpop.f32.mrf.mxu0
    %1606 = vdwg.mxu0
    %1607 = vmatprep.subr.bf16.mxu0 0
    %1608 = vmatpush1.bf16.msra.mxu0 %v1198
    %1609 = vmatprep.subr.bf16.mxu0 0
    %1610 = vmatpush1.bf16.msra.mxu0 %v1197
    %1611 = vmatprep.subr.bf16.mxu0 0
    %1612 = vmatpush1.bf16.msra.mxu0 %v1196
    %1613 = vmatprep.subr.bf16.mxu0 0
    %1614 = vmatpush1.bf16.msra.mxu0 %v1195
    %1615 = vmatprep.subr.bf16.mxu0 0
    %1616 = vmatpush1.bf16.msra.mxu0 %v1194
    %1617 = vmatprep.subr.bf16.mxu0 0
    %1618 = vmatpush1.bf16.msra.mxu0 %v1193
    %1619 = vmatprep.subr.bf16.mxu0 0
    %1620 = vmatpush1.bf16.msra.mxu0 %v1192
    %1621 = vmatprep.subr.bf16.mxu0 0
    %1622 = vmatpush1.bf16.msra.mxu0 %v1191
    %1623 = vmatprep.subr.bf16.mxu0 0
    %1624 = vmatpush2.bf16.msra.mxu0 %v1206
    %1625 = vmatprep.subr.bf16.mxu0 0
    %1626 = vmatpush2.bf16.msra.mxu0 %v1205
    %1627 = vmatprep.subr.bf16.mxu0 0
    %1628 = vmatpush2.bf16.msra.mxu0 %v1204
    %1629 = vmatprep.subr.bf16.mxu0 0
    %1630 = vmatpush2.bf16.msra.mxu0 %v1203
    %1631 = vmatprep.subr.bf16.mxu0 0
    %1632 = vmatpush2.bf16.msra.mxu0 %v1202
    %1633 = vmatprep.subr.bf16.mxu0 0
    %1634 = vmatpush2.bf16.msra.mxu0 %v1201
    %1635 = vmatprep.subr.bf16.mxu0 0
    %1636 = vmatpush2.bf16.msra.mxu0 %v1200
    %1637 = vmatprep.subr.bf16.mxu0 0
    %1638 = vmatpush2.bf16.msra.mxu0 %v1199
    %1639 = vmatprep.mubr.bf16.mxu0 %v456
    %1640 = vmatmul.mubr.bf16.gmra.mxu0 %v455
    %v1641 = vpop.f32.mrf.mxu0
    %v1642 = vadd.f32 %v1602, %v1641
    %v1643 = vpop.f32.mrf.mxu0
    %v1644 = vpop.f32.mrf.mxu0
    %v1645 = vpop.f32.mrf.mxu0
    %1646 = vdwg.mxu0
    %1647 = vmatprep.subr.bf16.mxu0 0
    %1648 = vmatpush1.bf16.msra.mxu0 %v1214
    %1649 = vmatprep.subr.bf16.mxu0 0
    %1650 = vmatpush1.bf16.msra.mxu0 %v1213
    %1651 = vmatprep.subr.bf16.mxu0 0
    %1652 = vmatpush1.bf16.msra.mxu0 %v1212
    %1653 = vmatprep.subr.bf16.mxu0 0
    %1654 = vmatpush1.bf16.msra.mxu0 %v1211
    %1655 = vmatprep.subr.bf16.mxu0 0
    %1656 = vmatpush1.bf16.msra.mxu0 %v1210
    %1657 = vmatprep.subr.bf16.mxu0 0
    %1658 = vmatpush1.bf16.msra.mxu0 %v1209
    %1659 = vmatprep.subr.bf16.mxu0 0
    %1660 = vmatpush1.bf16.msra.mxu0 %v1208
    %1661 = vmatprep.subr.bf16.mxu0 0
    %1662 = vmatpush1.bf16.msra.mxu0 %v1207
    %1663 = vmatprep.subr.bf16.mxu0 0
    %1664 = vmatpush2.bf16.msra.mxu0 %v1222
    %1665 = vmatprep.subr.bf16.mxu0 0
    %1666 = vmatpush2.bf16.msra.mxu0 %v1221
    %1667 = vmatprep.subr.bf16.mxu0 0
    %1668 = vmatpush2.bf16.msra.mxu0 %v1220
    %1669 = vmatprep.subr.bf16.mxu0 0
    %1670 = vmatpush2.bf16.msra.mxu0 %v1219
    %1671 = vmatprep.subr.bf16.mxu0 0
    %1672 = vmatpush2.bf16.msra.mxu0 %v1218
    %1673 = vmatprep.subr.bf16.mxu0 0
    %1674 = vmatpush2.bf16.msra.mxu0 %v1217
    %1675 = vmatprep.subr.bf16.mxu0 0
    %1676 = vmatpush2.bf16.msra.mxu0 %v1216
    %1677 = vmatprep.subr.bf16.mxu0 0
    %1678 = vmatpush2.bf16.msra.mxu0 %v1215
    %1679 = vmatprep.mubr.bf16.mxu0 %v458
    %1680 = vmatmul.mubr.bf16.gmra.mxu0 %v457
    %v1681 = vpop.f32.mrf.mxu0
    %v1682 = vadd.f32 %v1642, %v1681
    %v1683 = vpop.f32.mrf.mxu0
    %v1684 = vpop.f32.mrf.mxu0
    %v1685 = vpop.f32.mrf.mxu0
    %1686 = vdwg.mxu0
    %1687 = vmatprep.subr.bf16.mxu0 0
    %1688 = vmatpush1.bf16.msra.mxu0 %v1230
    %1689 = vmatprep.subr.bf16.mxu0 0
    %1690 = vmatpush1.bf16.msra.mxu0 %v1229
    %1691 = vmatprep.subr.bf16.mxu0 0
    %1692 = vmatpush1.bf16.msra.mxu0 %v1228
    %1693 = vmatprep.subr.bf16.mxu0 0
    %1694 = vmatpush1.bf16.msra.mxu0 %v1227
    %1695 = vmatprep.subr.bf16.mxu0 0
    %1696 = vmatpush1.bf16.msra.mxu0 %v1226
    %1697 = vmatprep.subr.bf16.mxu0 0
    %1698 = vmatpush1.bf16.msra.mxu0 %v1225
    %1699 = vmatprep.subr.bf16.mxu0 0
    %1700 = vmatpush1.bf16.msra.mxu0 %v1224
    %1701 = vmatprep.subr.bf16.mxu0 0
    %1702 = vmatpush1.bf16.msra.mxu0 %v1223
    %1703 = vmatprep.subr.bf16.mxu0 0
    %1704 = vmatpush2.bf16.msra.mxu0 %v1238
    %1705 = vmatprep.subr.bf16.mxu0 0
    %1706 = vmatpush2.bf16.msra.mxu0 %v1237
    %1707 = vmatprep.subr.bf16.mxu0 0
    %1708 = vmatpush2.bf16.msra.mxu0 %v1236
    %1709 = vmatprep.subr.bf16.mxu0 0
    %1710 = vmatpush2.bf16.msra.mxu0 %v1235
    %1711 = vmatprep.subr.bf16.mxu0 0
    %1712 = vmatpush2.bf16.msra.mxu0 %v1234
    %1713 = vmatprep.subr.bf16.mxu0 0
    %1714 = vmatpush2.bf16.msra.mxu0 %v1233
    %1715 = vmatprep.subr.bf16.mxu0 0
    %1716 = vmatpush2.bf16.msra.mxu0 %v1232
    %1717 = vmatprep.subr.bf16.mxu0 0
    %1718 = vmatpush2.bf16.msra.mxu0 %v1231
    %1719 = vmatprep.mubr.bf16.mxu0 %v460
    %1720 = vmatmul.mubr.bf16.gmra.mxu0 %v459
    %v1721 = vpop.f32.mrf.mxu0
    %v1722 = vadd.f32 %v1682, %v1721
    %v1723 = vpop.f32.mrf.mxu0
    %v1724 = vpop.f32.mrf.mxu0
    %v1725 = vpop.f32.mrf.mxu0
    %1726 = vdwg.mxu0
    %1727 = vmatprep.subr.bf16.mxu0 0
    %1728 = vmatpush1.bf16.msra.mxu0 %v1246
    %1729 = vmatprep.subr.bf16.mxu0 0
    %1730 = vmatpush1.bf16.msra.mxu0 %v1245
    %1731 = vmatprep.subr.bf16.mxu0 0
    %1732 = vmatpush1.bf16.msra.mxu0 %v1244
    %1733 = vmatprep.subr.bf16.mxu0 0
    %1734 = vmatpush1.bf16.msra.mxu0 %v1243
    %1735 = vmatprep.subr.bf16.mxu0 0
    %1736 = vmatpush1.bf16.msra.mxu0 %v1242
    %1737 = vmatprep.subr.bf16.mxu0 0
    %1738 = vmatpush1.bf16.msra.mxu0 %v1241
    %1739 = vmatprep.subr.bf16.mxu0 0
    %1740 = vmatpush1.bf16.msra.mxu0 %v1240
    %1741 = vmatprep.subr.bf16.mxu0 0
    %1742 = vmatpush1.bf16.msra.mxu0 %v1239
    %1743 = vmatprep.subr.bf16.mxu0 0
    %1744 = vmatpush2.bf16.msra.mxu0 %v1254
    %1745 = vmatprep.subr.bf16.mxu0 0
    %1746 = vmatpush2.bf16.msra.mxu0 %v1253
    %1747 = vmatprep.subr.bf16.mxu0 0
    %1748 = vmatpush2.bf16.msra.mxu0 %v1252
    %1749 = vmatprep.subr.bf16.mxu0 0
    %1750 = vmatpush2.bf16.msra.mxu0 %v1251
    %1751 = vmatprep.subr.bf16.mxu0 0
    %1752 = vmatpush2.bf16.msra.mxu0 %v1250
    %1753 = vmatprep.subr.bf16.mxu0 0
    %1754 = vmatpush2.bf16.msra.mxu0 %v1249
    %1755 = vmatprep.subr.bf16.mxu0 0
    %1756 = vmatpush2.bf16.msra.mxu0 %v1248
    %1757 = vmatprep.subr.bf16.mxu0 0
    %1758 = vmatpush2.bf16.msra.mxu0 %v1247
    %1759 = vmatprep.mubr.bf16.mxu0 %v462
    %1760 = vmatmul.mubr.bf16.gmra.mxu0 %v461
    %v1761 = vpop.f32.mrf.mxu0
    %v1762 = vadd.f32 %v1722, %v1761
    %v1763 = vpop.f32.mrf.mxu0
    %v1764 = vpop.f32.mrf.mxu0
    %v1765 = vpop.f32.mrf.mxu0
    %1766 = vdwg.mxu0
    %1767 = vmatprep.subr.bf16.mxu0 0
    %1768 = vmatpush1.bf16.msra.mxu0 %v1262
    %1769 = vmatprep.subr.bf16.mxu0 0
    %1770 = vmatpush1.bf16.msra.mxu0 %v1261
    %1771 = vmatprep.subr.bf16.mxu0 0
    %1772 = vmatpush1.bf16.msra.mxu0 %v1260
    %1773 = vmatprep.subr.bf16.mxu0 0
    %1774 = vmatpush1.bf16.msra.mxu0 %v1259
    %1775 = vmatprep.subr.bf16.mxu0 0
    %1776 = vmatpush1.bf16.msra.mxu0 %v1258
    %1777 = vmatprep.subr.bf16.mxu0 0
    %1778 = vmatpush1.bf16.msra.mxu0 %v1257
    %1779 = vmatprep.subr.bf16.mxu0 0
    %1780 = vmatpush1.bf16.msra.mxu0 %v1256
    %1781 = vmatprep.subr.bf16.mxu0 0
    %1782 = vmatpush1.bf16.msra.mxu0 %v1255
    %1783 = vmatprep.subr.bf16.mxu0 0
    %1784 = vmatpush2.bf16.msra.mxu0 %v1270
    %1785 = vmatprep.subr.bf16.mxu0 0
    %1786 = vmatpush2.bf16.msra.mxu0 %v1269
    %1787 = vmatprep.subr.bf16.mxu0 0
    %1788 = vmatpush2.bf16.msra.mxu0 %v1268
    %1789 = vmatprep.subr.bf16.mxu0 0
    %1790 = vmatpush2.bf16.msra.mxu0 %v1267
    %1791 = vmatprep.subr.bf16.mxu0 0
    %1792 = vmatpush2.bf16.msra.mxu0 %v1266
    %1793 = vmatprep.subr.bf16.mxu0 0
    %1794 = vmatpush2.bf16.msra.mxu0 %v1265
    %1795 = vmatprep.subr.bf16.mxu0 0
    %1796 = vmatpush2.bf16.msra.mxu0 %v1264
    %1797 = vmatprep.subr.bf16.mxu0 0
    %1798 = vmatpush2.bf16.msra.mxu0 %v1263
    %1799 = vmatprep.mubr.bf16.mxu0 %v464
    %1800 = vmatmul.mubr.bf16.gmra.mxu0 %v463
    %v1801 = vpop.f32.mrf.mxu0
    %v1802 = vadd.f32 %v1762, %v1801
    %v1803 = vpop.f32.mrf.mxu0
    %v1804 = vpop.f32.mrf.mxu0
    %v1805 = vpop.f32.mrf.mxu0
    %1806 = vdwg.mxu0
    %1807 = vmatprep.subr.bf16.mxu0 0
    %1808 = vmatpush1.bf16.msra.mxu0 %v1278
    %1809 = vmatprep.subr.bf16.mxu0 0
    %1810 = vmatpush1.bf16.msra.mxu0 %v1277
    %1811 = vmatprep.subr.bf16.mxu0 0
    %1812 = vmatpush1.bf16.msra.mxu0 %v1276
    %1813 = vmatprep.subr.bf16.mxu0 0
    %1814 = vmatpush1.bf16.msra.mxu0 %v1275
    %1815 = vmatprep.subr.bf16.mxu0 0
    %1816 = vmatpush1.bf16.msra.mxu0 %v1274
    %1817 = vmatprep.subr.bf16.mxu0 0
    %1818 = vmatpush1.bf16.msra.mxu0 %v1273
    %1819 = vmatprep.subr.bf16.mxu0 0
    %1820 = vmatpush1.bf16.msra.mxu0 %v1272
    %1821 = vmatprep.subr.bf16.mxu0 0
    %1822 = vmatpush1.bf16.msra.mxu0 %v1271
    %1823 = vmatprep.subr.bf16.mxu0 0
    %1824 = vmatpush2.bf16.msra.mxu0 %v1286
    %1825 = vmatprep.subr.bf16.mxu0 0
    %1826 = vmatpush2.bf16.msra.mxu0 %v1285
    %1827 = vmatprep.subr.bf16.mxu0 0
    %1828 = vmatpush2.bf16.msra.mxu0 %v1284
    %1829 = vmatprep.subr.bf16.mxu0 0
    %1830 = vmatpush2.bf16.msra.mxu0 %v1283
    %1831 = vmatprep.subr.bf16.mxu0 0
    %1832 = vmatpush2.bf16.msra.mxu0 %v1282
    %1833 = vmatprep.subr.bf16.mxu0 0
    %1834 = vmatpush2.bf16.msra.mxu0 %v1281
    %1835 = vmatprep.subr.bf16.mxu0 0
    %1836 = vmatpush2.bf16.msra.mxu0 %v1280
    %1837 = vmatprep.subr.bf16.mxu0 0
    %1838 = vmatpush2.bf16.msra.mxu0 %v1279
    %1839 = vmatprep.mubr.bf16.mxu0 %v466
    %1840 = vmatmul.mubr.bf16.gmra.mxu0 %v465
    %v1841 = vpop.f32.mrf.mxu0
    %v1842 = vadd.f32 %v1802, %v1841
    %v1843 = vpop.f32.mrf.mxu0
    %v1844 = vpop.f32.mrf.mxu0
    %v1845 = vpop.f32.mrf.mxu0
    %1846 = vdwg.mxu0
    %v1847 = vmax.f32 %v1842, 0.0
    %v1848 = vpack.c.bf16 %v1847, %v1847
    %v1849 = vld [vmem:[%s3] sm:$0xf]
    %v1850 = vld [vmem:[%s3 + $0x4] sm:$0xf]
    %v1851 = vld [vmem:[%s3 + $0x8] sm:$0xf]
    %v1852 = vld [vmem:[%s3 + $0xc] sm:$0xf]
    %v1853 = vld [vmem:[%s3 + $0x10] sm:$0xf]
    %v1854 = vld [vmem:[%s3 + $0x14] sm:$0xf]
    %v1855 = vld [vmem:[%s3 + $0x18] sm:$0xf]
    %v1856 = vld [vmem:[%s3 + $0x1c] sm:$0xf]
    %v1857 = vld [vmem:[%s3 + $0x20] sm:$0xf]
    %v1858 = vld [vmem:[%s3 + $0x24] sm:$0xf]
    %v1859 = vld [vmem:[%s3 + $0x28] sm:$0xf]
    %v1860 = vld [vmem:[%s3 + $0x2c] sm:$0xf]
    %v1861 = vld [vmem:[%s3 + $0x30] sm:$0xf]
    %v1862 = vld [vmem:[%s3 + $0x34] sm:$0xf]
    %v1863 = vld [vmem:[%s3 + $0x38] sm:$0xf]
    %v1864 = vld [vmem:[%s3 + $0x3c] sm:$0xf]
    %v1865 = vld [vmem:[%s4] sm:$0x1]
    %v1867 = vlaneseq
    %v1868 = vshrl.u32 %v1867, 7
    %v1869 = vsub.s32 0, %v1868
    %v1870 = vrot.slane %v1865, %v1869
    %v1888 = vunpack.c.l.b16 %v1849
    %v1889 = vunpack.c.l.b16 %v1850
    %v1890 = vunpack.c.l.b16 %v1851
    %v1891 = vunpack.c.l.b16 %v1852
    %v1892 = vunpack.c.l.b16 %v1853
    %v1893 = vunpack.c.l.b16 %v1854
    %v1894 = vunpack.c.l.b16 %v1855
    %v1895 = vunpack.c.l.b16 %v1856
    %v1896 = vunpack.c.l.b16 %v1857
    %v1897 = vunpack.c.l.b16 %v1858
    %v1898 = vunpack.c.l.b16 %v1859
    %v1899 = vunpack.c.l.b16 %v1860
    %v1900 = vunpack.c.l.b16 %v1861
    %v1901 = vunpack.c.l.b16 %v1862
    %v1902 = vunpack.c.l.b16 %v1863
    %v1903 = vunpack.c.l.b16 %v1864
    %v1904 = vpack.c.b16 %v1889, %v1888
    %v1905 = vpack.c.b16 %v1891, %v1890
    %v1906 = vpack.c.b16 %v1893, %v1892
    %v1907 = vpack.c.b16 %v1895, %v1894
    %v1908 = vpack.c.b16 %v1897, %v1896
    %v1909 = vpack.c.b16 %v1899, %v1898
    %v1910 = vpack.c.b16 %v1901, %v1900
    %v1911 = vpack.c.b16 %v1903, %v1902
    %1920 = vmatprep.subr.bf16.mxu0 0
    %1921 = vmatpush1.bf16.msra.mxu0 %v1911
    %1922 = vmatprep.subr.bf16.mxu0 0
    %1923 = vmatpush1.bf16.msra.mxu0 %v1910
    %1924 = vmatprep.subr.bf16.mxu0 0
    %1925 = vmatpush1.bf16.msra.mxu0 %v1909
    %1926 = vmatprep.subr.bf16.mxu0 0
    %1927 = vmatpush1.bf16.msra.mxu0 %v1908
    %1928 = vmatprep.subr.bf16.mxu0 0
    %1929 = vmatpush1.bf16.msra.mxu0 %v1907
    %1930 = vmatprep.subr.bf16.mxu0 0
    %1931 = vmatpush1.bf16.msra.mxu0 %v1906
    %1932 = vmatprep.subr.bf16.mxu0 0
    %1933 = vmatpush1.bf16.msra.mxu0 %v1905
    %1934 = vmatprep.subr.bf16.mxu0 0
    %1935 = vmatpush1.bf16.msra.mxu0 %v1904
    %1936 = vmatprep.subr.bf16.mxu0 0
    %1937 = vmatpush2.bf16.msra.mxu0 0
    %1938 = vmatprep.subr.bf16.mxu0 0
    %1939 = vmatpush2.bf16.msra.mxu0 0
    %1940 = vmatprep.subr.bf16.mxu0 0
    %1941 = vmatpush2.bf16.msra.mxu0 0
    %1942 = vmatprep.subr.bf16.mxu0 0
    %1943 = vmatpush2.bf16.msra.mxu0 0
    %1944 = vmatprep.subr.bf16.mxu0 0
    %1945 = vmatpush2.bf16.msra.mxu0 0
    %1946 = vmatprep.subr.bf16.mxu0 0
    %1947 = vmatpush2.bf16.msra.mxu0 0
    %1948 = vmatprep.subr.bf16.mxu0 0
    %1949 = vmatpush2.bf16.msra.mxu0 0
    %1950 = vmatprep.subr.bf16.mxu0 0
    %1951 = vmatpush2.bf16.msra.mxu0 0
    %1952 = vmatprep.mubr.bf16.mxu0 0
    %1953 = vmatmul.mubr.bf16.gmra.mxu0 %v1848
    %v1954 = vpop.f32.mrf.mxu0
    %v1955 = vadd.f32 %v1870, %v1954
    %v1956 = vpop.f32.mrf.mxu0
    %v1957 = vpop.f32.mrf.mxu0
    %v1958 = vpop.f32.mrf.mxu0
    %1959 = vdwg.mxu0
    %v1960 = vmax.f32 %v1955, 0.0
    %v1961 = vpack.c.bf16 %v1960, %v1960
    %v1962 = vld [vmem:[%s5] sm:$0xf]
    %v1963 = vld [vmem:[%s5 + $0x4] sm:$0xf]
    %v1964 = vld [vmem:[%s5 + $0x8] sm:$0xf]
    %v1965 = vld [vmem:[%s5 + $0xc] sm:$0xf]
    %v1966 = vld [vmem:[%s5 + $0x10] sm:$0xf]
    %v1967 = vld [vmem:[%s5 + $0x14] sm:$0xf]
    %v1968 = vld [vmem:[%s5 + $0x18] sm:$0xf]
    %v1969 = vld [vmem:[%s5 + $0x1c] sm:$0xf]
    %v1970 = vld [vmem:[%s5 + $0x20] sm:$0xf]
    %v1971 = vld [vmem:[%s5 + $0x24] sm:$0xf]
    %v1972 = vld [vmem:[%s5 + $0x28] sm:$0xf]
    %v1973 = vld [vmem:[%s5 + $0x2c] sm:$0xf]
    %v1974 = vld [vmem:[%s5 + $0x30] sm:$0xf]
    %v1975 = vld [vmem:[%s5 + $0x34] sm:$0xf]
    %v1976 = vld [vmem:[%s5 + $0x38] sm:$0xf]
    %v1977 = vld [vmem:[%s5 + $0x3c] sm:$0xf]
    %v1978 = vld [vmem:[%s6] sm:$0x1]
    %v1980 = vlaneseq
    %v1981 = vshrl.u32 %v1980, 7
    %v1982 = vsub.s32 0, %v1981
    %v1983 = vrot.slane %v1978, %v1982
    %v2001 = vunpack.c.l.b16 %v1962
    %v2002 = vunpack.c.l.b16 %v1963
    %v2003 = vunpack.c.l.b16 %v1964
    %v2004 = vunpack.c.l.b16 %v1965
    %v2005 = vunpack.c.l.b16 %v1966
    %v2006 = vunpack.c.l.b16 %v1967
    %v2007 = vunpack.c.l.b16 %v1968
    %v2008 = vunpack.c.l.b16 %v1969
    %v2009 = vunpack.c.l.b16 %v1970
    %v2010 = vunpack.c.l.b16 %v1971
    %v2011 = vunpack.c.l.b16 %v1972
    %v2012 = vunpack.c.l.b16 %v1973
    %v2013 = vunpack.c.l.b16 %v1974
    %v2014 = vunpack.c.l.b16 %v1975
    %v2015 = vunpack.c.l.b16 %v1976
    %v2016 = vunpack.c.l.b16 %v1977
    %v2017 = vpack.c.b16 %v2002, %v2001
    %v2018 = vpack.c.b16 %v2004, %v2003
    %v2019 = vpack.c.b16 %v2006, %v2005
    %v2020 = vpack.c.b16 %v2008, %v2007
    %v2021 = vpack.c.b16 %v2010, %v2009
    %v2022 = vpack.c.b16 %v2012, %v2011
    %v2023 = vpack.c.b16 %v2014, %v2013
    %v2024 = vpack.c.b16 %v2016, %v2015
    %2033 = vmatprep.subr.bf16.mxu0 0
    %2034 = vmatpush1.bf16.msra.mxu0 %v2024
    %2035 = vmatprep.subr.bf16.mxu0 0
    %2036 = vmatpush1.bf16.msra.mxu0 %v2023
    %2037 = vmatprep.subr.bf16.mxu0 0
    %2038 = vmatpush1.bf16.msra.mxu0 %v2022
    %2039 = vmatprep.subr.bf16.mxu0 0
    %2040 = vmatpush1.bf16.msra.mxu0 %v2021
    %2041 = vmatprep.subr.bf16.mxu0 0
    %2042 = vmatpush1.bf16.msra.mxu0 %v2020
    %2043 = vmatprep.subr.bf16.mxu0 0
    %2044 = vmatpush1.bf16.msra.mxu0 %v2019
    %2045 = vmatprep.subr.bf16.mxu0 0
    %2046 = vmatpush1.bf16.msra.mxu0 %v2018
    %2047 = vmatprep.subr.bf16.mxu0 0
    %2048 = vmatpush1.bf16.msra.mxu0 %v2017
    %2049 = vmatprep.subr.bf16.mxu0 0
    %2050 = vmatpush2.bf16.msra.mxu0 0
    %2051 = vmatprep.subr.bf16.mxu0 0
    %2052 = vmatpush2.bf16.msra.mxu0 0
    %2053 = vmatprep.subr.bf16.mxu0 0
    %2054 = vmatpush2.bf16.msra.mxu0 0
    %2055 = vmatprep.subr.bf16.mxu0 0
    %2056 = vmatpush2.bf16.msra.mxu0 0
    %2057 = vmatprep.subr.bf16.mxu0 0
    %2058 = vmatpush2.bf16.msra.mxu0 0
    %2059 = vmatprep.subr.bf16.mxu0 0
    %2060 = vmatpush2.bf16.msra.mxu0 0
    %2061 = vmatprep.subr.bf16.mxu0 0
    %2062 = vmatpush2.bf16.msra.mxu0 0
    %2063 = vmatprep.subr.bf16.mxu0 0
    %2064 = vmatpush2.bf16.msra.mxu0 0
    %2065 = vmatprep.mubr.bf16.mxu0 0
    %2066 = vmatmul.mubr.bf16.gmra.mxu0 %v1961
    %v2067 = vpop.f32.mrf.mxu0
    %v2068 = vadd.f32 %v1983, %v2067
    %v2069 = vpop.f32.mrf.mxu0
    %v2070 = vpop.f32.mrf.mxu0
    %v2071 = vpop.f32.mrf.mxu0
    %2072 = vdwg.mxu0
    %v2073 = vmax.f32 %v2068, 0.0
    %v2074 = vpack.c.bf16 %v2073, %v2073
    %v2075 = vld [vmem:[#allocation4] sm:$0xf]
    %v2076 = vld [vmem:[#allocation4 + $0x4] sm:$0xf]
    %v2077 = vld [vmem:[#allocation4 + $0x8] sm:$0xf]
    %v2078 = vld [vmem:[#allocation4 + $0xc] sm:$0xf]
    %v2079 = vld [vmem:[#allocation4 + $0x10] sm:$0xf]
    %v2080 = vld [vmem:[#allocation4 + $0x14] sm:$0xf]
    %v2081 = vld [vmem:[#allocation4 + $0x18] sm:$0xf]
    %v2082 = vld [vmem:[#allocation4 + $0x1c] sm:$0xf]
    %v2083 = vld [vmem:[#allocation4 + $0x20] sm:$0xf]
    %v2084 = vld [vmem:[#allocation4 + $0x24] sm:$0xf]
    %v2085 = vld [vmem:[#allocation4 + $0x28] sm:$0xf]
    %v2086 = vld [vmem:[#allocation4 + $0x2c] sm:$0xf]
    %v2087 = vld [vmem:[#allocation4 + $0x30] sm:$0xf]
    %v2088 = vld [vmem:[#allocation4 + $0x34] sm:$0xf]
    %v2089 = vld [vmem:[#allocation4 + $0x38] sm:$0xf]
    %v2090 = vld [vmem:[#allocation4 + $0x3c] sm:$0xf]
    %v2091 = vld [vmem:[%s8] sm:$0x1]
    %v2093 = vlaneseq
    %v2094 = vshrl.u32 %v2093, 7
    %v2095 = vsub.s32 0, %v2094
    %v2096 = vrot.slane %v2091, %v2095
    %v2114 = vunpack.c.l.b16 %v2075
    %v2115 = vunpack.c.l.b16 %v2076
    %v2116 = vunpack.c.l.b16 %v2077
    %v2117 = vunpack.c.l.b16 %v2078
    %v2118 = vunpack.c.l.b16 %v2079
    %v2119 = vunpack.c.l.b16 %v2080
    %v2120 = vunpack.c.l.b16 %v2081
    %v2121 = vunpack.c.l.b16 %v2082
    %v2122 = vunpack.c.l.b16 %v2083
    %v2123 = vunpack.c.l.b16 %v2084
    %v2124 = vunpack.c.l.b16 %v2085
    %v2125 = vunpack.c.l.b16 %v2086
    %v2126 = vunpack.c.l.b16 %v2087
    %v2127 = vunpack.c.l.b16 %v2088
    %v2128 = vunpack.c.l.b16 %v2089
    %v2129 = vunpack.c.l.b16 %v2090
    %v2130 = vpack.c.b16 %v2115, %v2114
    %v2131 = vpack.c.b16 %v2117, %v2116
    %v2132 = vpack.c.b16 %v2119, %v2118
    %v2133 = vpack.c.b16 %v2121, %v2120
    %v2134 = vpack.c.b16 %v2123, %v2122
    %v2135 = vpack.c.b16 %v2125, %v2124
    %v2136 = vpack.c.b16 %v2127, %v2126
    %v2137 = vpack.c.b16 %v2129, %v2128
    %2146 = vmatprep.subr.bf16.mxu0 0
    %2147 = vmatpush1.bf16.msra.mxu0 %v2137
    %2148 = vmatprep.subr.bf16.mxu0 0
    %2149 = vmatpush1.bf16.msra.mxu0 %v2136
    %2150 = vmatprep.subr.bf16.mxu0 0
    %2151 = vmatpush1.bf16.msra.mxu0 %v2135
    %2152 = vmatprep.subr.bf16.mxu0 0
    %2153 = vmatpush1.bf16.msra.mxu0 %v2134
    %2154 = vmatprep.subr.bf16.mxu0 0
    %2155 = vmatpush1.bf16.msra.mxu0 %v2133
    %2156 = vmatprep.subr.bf16.mxu0 0
    %2157 = vmatpush1.bf16.msra.mxu0 %v2132
    %2158 = vmatprep.subr.bf16.mxu0 0
    %2159 = vmatpush1.bf16.msra.mxu0 %v2131
    %2160 = vmatprep.subr.bf16.mxu0 0
    %2161 = vmatpush1.bf16.msra.mxu0 %v2130
    %2162 = vmatprep.subr.bf16.mxu0 0
    %2163 = vmatpush2.bf16.msra.mxu0 0
    %2164 = vmatprep.subr.bf16.mxu0 0
    %2165 = vmatpush2.bf16.msra.mxu0 0
    %2166 = vmatprep.subr.bf16.mxu0 0
    %2167 = vmatpush2.bf16.msra.mxu0 0
    %2168 = vmatprep.subr.bf16.mxu0 0
    %2169 = vmatpush2.bf16.msra.mxu0 0
    %2170 = vmatprep.subr.bf16.mxu0 0
    %2171 = vmatpush2.bf16.msra.mxu0 0
    %2172 = vmatprep.subr.bf16.mxu0 0
    %2173 = vmatpush2.bf16.msra.mxu0 0
    %2174 = vmatprep.subr.bf16.mxu0 0
    %2175 = vmatpush2.bf16.msra.mxu0 0
    %2176 = vmatprep.subr.bf16.mxu0 0
    %2177 = vmatpush2.bf16.msra.mxu0 0
    %2178 = vmatprep.mubr.bf16.mxu0 0
    %2179 = vmatmul.mubr.bf16.gmra.mxu0 %v2074
    %v2180 = vpop.f32.mrf.mxu0
    %v2181 = vadd.f32 %v2096, %v2180
    %v2182 = vpop.f32.mrf.mxu0
    %v2183 = vpop.f32.mrf.mxu0
    %v2184 = vpop.f32.mrf.mxu0
    %2185 = vdwg.mxu0
    %v2186 = vpack.c.bf16 %v2181, %v2181
    %v2187 = vld [vmem:[#allocation6] sm:$0xf]
    %v2188 = vld [vmem:[#allocation6 + $0x4] sm:$0xf]
    %v2189 = vld [vmem:[#allocation6 + $0x8] sm:$0xf]
    %v2190 = vld [vmem:[#allocation6 + $0xc] sm:$0xf]
    %v2191 = vld [vmem:[#allocation6 + $0x10] sm:$0xf]
    %v2192 = vld [vmem:[#allocation6 + $0x14] sm:$0xf]
    %v2193 = vld [vmem:[#allocation6 + $0x18] sm:$0xf]
    %v2194 = vld [vmem:[#allocation6 + $0x1c] sm:$0xf]
    %v2195 = vld [vmem:[#allocation6 + $0x20] sm:$0xf]
    %v2196 = vld [vmem:[#allocation6 + $0x24] sm:$0xf]
    %v2197 = vld [vmem:[#allocation6 + $0x28] sm:$0xf]
    %v2198 = vld [vmem:[#allocation6 + $0x2c] sm:$0xf]
    %v2199 = vld [vmem:[#allocation6 + $0x30] sm:$0xf]
    %v2200 = vld [vmem:[#allocation6 + $0x34] sm:$0xf]
    %v2201 = vld [vmem:[#allocation6 + $0x38] sm:$0xf]
    %v2202 = vld [vmem:[#allocation6 + $0x3c] sm:$0xf]
    %v2203 = vld [vmem:[%s10] sm:$0x1]
    %v2205 = vlaneseq
    %v2206 = vshrl.u32 %v2205, 7
    %v2207 = vsub.s32 0, %v2206
    %v2208 = vrot.slane %v2203, %v2207
    %v2226 = vunpack.c.l.b16 %v2187
    %v2227 = vunpack.c.l.b16 %v2188
    %v2228 = vunpack.c.l.b16 %v2189
    %v2229 = vunpack.c.l.b16 %v2190
    %v2230 = vunpack.c.l.b16 %v2191
    %v2231 = vunpack.c.l.b16 %v2192
    %v2232 = vunpack.c.l.b16 %v2193
    %v2233 = vunpack.c.l.b16 %v2194
    %v2234 = vunpack.c.l.b16 %v2195
    %v2235 = vunpack.c.l.b16 %v2196
    %v2236 = vunpack.c.l.b16 %v2197
    %v2237 = vunpack.c.l.b16 %v2198
    %v2238 = vunpack.c.l.b16 %v2199
    %v2239 = vunpack.c.l.b16 %v2200
    %v2240 = vunpack.c.l.b16 %v2201
    %v2241 = vunpack.c.l.b16 %v2202
    %v2242 = vpack.c.b16 %v2227, %v2226
    %v2243 = vpack.c.b16 %v2229, %v2228
    %v2244 = vpack.c.b16 %v2231, %v2230
    %v2245 = vpack.c.b16 %v2233, %v2232
    %v2246 = vpack.c.b16 %v2235, %v2234
    %v2247 = vpack.c.b16 %v2237, %v2236
    %v2248 = vpack.c.b16 %v2239, %v2238
    %v2249 = vpack.c.b16 %v2241, %v2240
    %2258 = vmatprep.subr.bf16.mxu0 0
    %2259 = vmatpush1.bf16.msra.mxu0 %v2249
    %2260 = vmatprep.subr.bf16.mxu0 0
    %2261 = vmatpush1.bf16.msra.mxu0 %v2248
    %2262 = vmatprep.subr.bf16.mxu0 0
    %2263 = vmatpush1.bf16.msra.mxu0 %v2247
    %2264 = vmatprep.subr.bf16.mxu0 0
    %2265 = vmatpush1.bf16.msra.mxu0 %v2246
    %2266 = vmatprep.subr.bf16.mxu0 0
    %2267 = vmatpush1.bf16.msra.mxu0 %v2245
    %2268 = vmatprep.subr.bf16.mxu0 0
    %2269 = vmatpush1.bf16.msra.mxu0 %v2244
    %2270 = vmatprep.subr.bf16.mxu0 0
    %2271 = vmatpush1.bf16.msra.mxu0 %v2243
    %2272 = vmatprep.subr.bf16.mxu0 0
    %2273 = vmatpush1.bf16.msra.mxu0 %v2242
    %2274 = vmatprep.subr.bf16.mxu0 0
    %2275 = vmatpush2.bf16.msra.mxu0 0
    %2276 = vmatprep.subr.bf16.mxu0 0
    %2277 = vmatpush2.bf16.msra.mxu0 0
    %2278 = vmatprep.subr.bf16.mxu0 0
    %2279 = vmatpush2.bf16.msra.mxu0 0
    %2280 = vmatprep.subr.bf16.mxu0 0
    %2281 = vmatpush2.bf16.msra.mxu0 0
    %2282 = vmatprep.subr.bf16.mxu0 0
    %2283 = vmatpush2.bf16.msra.mxu0 0
    %2284 = vmatprep.subr.bf16.mxu0 0
    %2285 = vmatpush2.bf16.msra.mxu0 0
    %2286 = vmatprep.subr.bf16.mxu0 0
    %2287 = vmatpush2.bf16.msra.mxu0 0
    %2288 = vmatprep.subr.bf16.mxu0 0
    %2289 = vmatpush2.bf16.msra.mxu0 0
    %2290 = vmatprep.mubr.bf16.mxu0 0
    %2291 = vmatmul.mubr.bf16.gmra.mxu0 %v2186
    %v2292 = vpop.f32.mrf.mxu0
    %v2293 = vadd.f32 %v2208, %v2292
    %v2294 = vpop.f32.mrf.mxu0
    %v2295 = vpop.f32.mrf.mxu0
    %v2296 = vpop.f32.mrf.mxu0
    %2297 = vdwg.mxu0
    %2298 = vst [vmem:[%s11] sm:$0xff] %v2293
    // Predicated region
    $region58: #{mlp_debug_pallas.1} parent=1 // pred_check
      _
    $region59: #{mlp_debug_pallas.1} parent=1 // pred_check_branch
      %2300 = sbr.rel (0) target = $region61
    $region60: #{mlp_debug_pallas.1} parent=1 // pred_region
      _
    $region61: #{mlp_debug_pallas.1} parent=1 // pred_fallthru
      _
    // Predicated region
    $region62: #{mlp_debug_pallas.1} parent=1 // pred_check
      _
    $region63: #{mlp_debug_pallas.1} parent=1 // pred_check_branch
      %2302 = sbr.rel (0) target = $region65
    $region64: #{mlp_debug_pallas.1} parent=1 // pred_region
      _
    $region65: #{mlp_debug_pallas.1} parent=1 // pred_fallthru
      _
    %2303 = vsyncpa [#allocation3], 1
    %2304 = vsyncpa [#allocation5], 1

</llo_original>
